<compile_context>
chip_gen: v7x
topology: tpu7x:2x2x1
jax: 0.10.0
libtpu: 0.0.40
codegen_flags: <defaults>
</compile_context>

<pallas_src>
import functools

import jax
import jax.numpy as jnp
from jax import lax
from jax.experimental import pallas as pl
from jax.experimental.pallas import tpu as pltpu

# Rational(3,2) coefficients (deterministic init of the PyTorch Rational module).
# P(x) = 1.1915 x^3 + 1.5957 x^2 + 0.5 x + 0.0218 ;  Q(x) = 2.383 x^2 + 1.0
_P3, _P2, _P1, _P0 = 1.1915, 1.5957, 0.5, 0.0218
_Q2, _Q0 = 2.383, 1.0

_CHUNK = 256        # lanes per independent chain (2 f32 vregs wide)
_MAX_CHUNKS = 8     # max batch tile = 8 * 256 = 2048 lanes


def _rational(h):
    """P(h)/Q(h). Polynomial in h.dtype (bf16 on v6e/v7x); reciprocal on the EUP in f32."""
    num = ((_P3 * h + _P2) * h + _P1) * h + _P0          # Horner, VPU
    den = _Q2 * h * h + _Q0                              # >= 1, never near zero
    inv = pl.reciprocal(den.astype(jnp.float32), approx=True)   # EUP vrcp (f32-only op)
    return num * inv.astype(num.dtype)


def _gl_kernel(x_ref,
               w1_ref, b1_ref, w2_ref, b2_ref, w3_ref, b3_ref,
               w4_ref, b4_ref, w5_ref, b5_ref,
               o_ref, *, n_chunks, act_dtype):
    tile = o_ref.shape[-1]
    chunk = tile // n_chunks

    # Hoisted loads: weights (bf16) and biases (f32) are read once per grid step.
    ws = [r[...] for r in (w1_ref, w2_ref, w3_ref, w4_ref, w5_ref)]
    bs = [r[...] for r in (b1_ref, b2_ref, b3_ref, b4_ref, b5_ref)]

    # n_chunks independent chains in straight-line code: the scheduler co-issues
    # chunk-B matmuls (MXU) with chunk-A rational polynomials (VPU) / recips (EUP).
    for c in range(n_chunks):
        lo = c * chunk
        xc = x_ref[lo:lo + chunk, :].astype(jnp.bfloat16)        # (chunk, in_dim)
        # Layer 1: contract the in_dim axes of W (50,in) and x (chunk,in) -> (50, chunk),
        # i.e. W @ x_chunk.T -- batch stays on lanes, no wrapper transpose needed.
        h = lax.dot_general(ws[0], xc, (((1,), (1,)), ((), ())),
                            preferred_element_type=jnp.float32) + bs[0]
        h = _rational(h.astype(act_dtype)).astype(jnp.bfloat16)
        for li in range(1, 5):
            h = jnp.dot(ws[li], h, preferred_element_type=jnp.float32) + bs[li]
            if li < 4:
                h = _rational(h.astype(act_dtype)).astype(jnp.bfloat16)
        o_ref[:, lo:lo + chunk] = h.astype(o_ref.dtype)          # lane-dense store


def _pick_tiling(n):
    chunks_total = pl.cdiv(n, _CHUNK)
    chunks_per_tile = min(_MAX_CHUNKS, chunks_total)
    # Keep >= 2 grid steps whenever there is more than one chunk of work so the
    # "parallel" grid axis can be split over v7x's two TensorCores.
    if chunks_total > 1 and pl.cdiv(chunks_total, chunks_per_tile) == 1:
        chunks_per_tile = pl.cdiv(chunks_total, 2)
    return chunks_per_tile * _CHUNK, chunks_per_tile


def _default_act_dtype():
    try:
        kind = jax.devices()[0].device_kind.lower()
    except Exception:
        return jnp.float32
    # v5e and older have no packed-bf16 VALU/EUP: keep the rational in f32 there.
    if any(old in kind for old in ("v2", "v3", "v4", "v5")):
        return jnp.float32
    return jnp.bfloat16


def gl_forward(x, params, *, batch_tile=None, n_chunks=None, act_dtype=None):
    """x: (N, inpDim) float32.  params: list of (W (out,in) f32, b (out,1) f32)."""
    n, in_dim = x.shape
    if act_dtype is None:
        act_dtype = _default_act_dtype()
    if batch_tile is None:
        batch_tile, auto_chunks = _pick_tiling(n)
        n_chunks = auto_chunks if n_chunks is None else n_chunks
    elif n_chunks is None:
        n_chunks = max(1, batch_tile // _CHUNK)
    assert batch_tile % 128 == 0 and batch_tile % n_chunks == 0, \
        "batch_tile must be a multiple of 128 and of n_chunks"
    num_tiles = pl.cdiv(n, batch_tile)

    flat = [x]
    in_specs = [pl.BlockSpec((batch_tile, in_dim), lambda i: (i, 0))]
    for w, b in params:
        flat += [w.astype(jnp.bfloat16), b.astype(jnp.float32)]
        in_specs += [pl.BlockSpec(w.shape, lambda i: (0, 0)),    # full weight, resident
                     pl.BlockSpec(b.shape, lambda i: (0, 0))]    # full bias, resident

    flops = 2 * n * sum(w.shape[0] * w.shape[1] for w, _ in params)
    transcendentals = n * sum(w.shape[0] for w, _ in params[:-1])
    bytes_accessed = (x.size * 4 + n * 4
                      + sum(w.size * 2 + b.size * 4 for w, b in params))

    out = pl.pallas_call(
        functools.partial(_gl_kernel, n_chunks=n_chunks, act_dtype=act_dtype),
        out_shape=jax.ShapeDtypeStruct((1, n), jnp.float32),
        grid=(num_tiles,),
        in_specs=in_specs,
        out_specs=pl.BlockSpec((1, batch_tile), lambda i: (0, i)),
        compiler_params=pltpu.CompilerParams(
            dimension_semantics=("parallel",)),
        cost_estimate=pl.CostEstimate(
            flops=flops, transcendentals=transcendentals,
            bytes_accessed=bytes_accessed),
    )(*flat)

    return out[0, :, None]                                       # (N, 1)


def init_params(key, inp_dim):
    """Deterministic PyTorch-style nn.Linear init: U(-1/sqrt(fan_in), 1/sqrt(fan_in)).
    Weights kept in the PyTorch (out_features, in_features) layout."""
    dims = [(inp_dim, 50), (50, 50), (50, 50), (50, 50), (50, 1)]
    params = []
    for fan_in, fan_out in dims:
        key, kw, kb = jax.random.split(key, 3)
        bound = 1.0 / float(fan_in) ** 0.5
        w = jax.random.uniform(kw, (fan_out, fan_in), jnp.float32, -bound, bound)
        b = jax.random.uniform(kb, (fan_out, 1), jnp.float32, -bound, bound)
        params.append((w, b))
    return params


def gl_reference(x, params):
    """Pure-JAX reference of the PyTorch forward (same bf16 matmul operands as the
    kernel, but f32-exact rational activations)."""
    h = x
    for i, (w, b) in enumerate(params):
        h = jnp.dot(h.astype(jnp.bfloat16), w.astype(jnp.bfloat16).T,
                    preferred_element_type=jnp.float32) + b[:, 0]
        if i < len(params) - 1:
            num = ((_P3 * h + _P2) * h + _P1) * h + _P0
            den = _Q2 * h * h + _Q0
            h = num / den
    return h


if __name__ == "__main__":
    key = jax.random.PRNGKey(0)
    key, kx = jax.random.split(key)

    N, INP_DIM = 64, 8
    x = jax.random.normal(kx, (N, INP_DIM), jnp.float32)
    params = init_params(key, INP_DIM)

    out = gl_forward(x, params)            # tiling + activation dtype auto-picked
    out = jax.block_until_ready(out)

    ref = gl_reference(x, params)
    assert out.shape == (N, 1)
    max_err = jnp.max(jnp.abs(out - ref))
    # bf16 matmul operands (+ bf16 rationals on v6e/v7x) + approx reciprocal:
    # loosened tolerance vs the f32-exact PyTorch path.
    assert jnp.allclose(out, ref, atol=3e-2, rtol=3e-2), \
        f"mismatch vs reference (max err {max_err})"

    print("KERNEL_OK")
</pallas_src>

<mosaic_0001>
module attributes {stable_mosaic.version = 11 : i64} {
  func.func @_gl_kernel(%arg0: i32, %arg1: memref<256x8xf32, #tpu.memory_space<vmem>>, %arg2: memref<50x8xbf16, #tpu.memory_space<vmem>>, %arg3: memref<50x1xf32, #tpu.memory_space<vmem>>, %arg4: memref<50x50xbf16, #tpu.memory_space<vmem>>, %arg5: memref<50x1xf32, #tpu.memory_space<vmem>>, %arg6: memref<50x50xbf16, #tpu.memory_space<vmem>>, %arg7: memref<50x1xf32, #tpu.memory_space<vmem>>, %arg8: memref<50x50xbf16, #tpu.memory_space<vmem>>, %arg9: memref<50x1xf32, #tpu.memory_space<vmem>>, %arg10: memref<1x50xbf16, #tpu.memory_space<vmem>>, %arg11: memref<1x1xf32, #tpu.memory_space<vmem>>, %arg12: memref<1x256xf32, #tpu.memory_space<vmem>>) attributes {dimension_semantics = [#tpu.dimension_semantics<parallel>], iteration_bounds = array<i64: 1>, scalar_prefetch = 0 : i64, scratch_operands = 0 : i64, tpu.core_type = #tpu.core_type<tc>, window_params = [{transform_indices = @transform_0, window_bounds = array<i64: 256, 8>}, {pipeline_mode = #tpu.pipeline_mode<synchronous>, transform_indices = @transform_1, window_bounds = array<i64: 50, 8>}, {pipeline_mode = #tpu.pipeline_mode<synchronous>, transform_indices = @transform_2, window_bounds = array<i64: 50, 1>}, {pipeline_mode = #tpu.pipeline_mode<synchronous>, transform_indices = @transform_3, window_bounds = array<i64: 50, 50>}, {pipeline_mode = #tpu.pipeline_mode<synchronous>, transform_indices = @transform_4, window_bounds = array<i64: 50, 1>}, {pipeline_mode = #tpu.pipeline_mode<synchronous>, transform_indices = @transform_5, window_bounds = array<i64: 50, 50>}, {pipeline_mode = #tpu.pipeline_mode<synchronous>, transform_indices = @transform_6, window_bounds = array<i64: 50, 1>}, {pipeline_mode = #tpu.pipeline_mode<synchronous>, transform_indices = @transform_7, window_bounds = array<i64: 50, 50>}, {pipeline_mode = #tpu.pipeline_mode<synchronous>, transform_indices = @transform_8, window_bounds = array<i64: 50, 1>}, {pipeline_mode = #tpu.pipeline_mode<synchronous>, transform_indices = @transform_9, window_bounds = array<i64: 1, 50>}, {pipeline_mode = #tpu.pipeline_mode<synchronous>, transform_indices = @transform_10, window_bounds = array<i64: 1, 1>}, {transform_indices = @transform_11, window_bounds = array<i64: 1, 256>}]} {
    %c0 = arith.constant 0 : index
    %c0_0 = arith.constant 0 : index
    %0 = vector.load %arg2[%c0, %c0_0] : memref<50x8xbf16, #tpu.memory_space<vmem>>, vector<50x8xbf16>
    %c0_1 = arith.constant 0 : index
    %c0_2 = arith.constant 0 : index
    %1 = vector.load %arg4[%c0_1, %c0_2] : memref<50x50xbf16, #tpu.memory_space<vmem>>, vector<50x50xbf16>
    %c0_3 = arith.constant 0 : index
    %c0_4 = arith.constant 0 : index
    %2 = vector.load %arg6[%c0_3, %c0_4] : memref<50x50xbf16, #tpu.memory_space<vmem>>, vector<50x50xbf16>
    %c0_5 = arith.constant 0 : index
    %c0_6 = arith.constant 0 : index
    %3 = vector.load %arg8[%c0_5, %c0_6] : memref<50x50xbf16, #tpu.memory_space<vmem>>, vector<50x50xbf16>
    %c0_7 = arith.constant 0 : index
    %c0_8 = arith.constant 0 : index
    %4 = vector.load %arg10[%c0_7, %c0_8] : memref<1x50xbf16, #tpu.memory_space<vmem>>, vector<1x50xbf16>
    %c0_9 = arith.constant 0 : index
    %c0_10 = arith.constant 0 : index
    %5 = vector.load %arg3[%c0_9, %c0_10] : memref<50x1xf32, #tpu.memory_space<vmem>>, vector<50x1xf32>
    %c0_11 = arith.constant 0 : index
    %c0_12 = arith.constant 0 : index
    %6 = vector.load %arg5[%c0_11, %c0_12] : memref<50x1xf32, #tpu.memory_space<vmem>>, vector<50x1xf32>
    %c0_13 = arith.constant 0 : index
    %c0_14 = arith.constant 0 : index
    %7 = vector.load %arg7[%c0_13, %c0_14] : memref<50x1xf32, #tpu.memory_space<vmem>>, vector<50x1xf32>
    %c0_15 = arith.constant 0 : index
    %c0_16 = arith.constant 0 : index
    %8 = vector.load %arg9[%c0_15, %c0_16] : memref<50x1xf32, #tpu.memory_space<vmem>>, vector<50x1xf32>
    %c0_17 = arith.constant 0 : index
    %c0_18 = arith.constant 0 : index
    %9 = vector.load %arg11[%c0_17, %c0_18] : memref<1x1xf32, #tpu.memory_space<vmem>>, vector<1x1xf32>
    %c0_19 = arith.constant 0 : index
    %c0_20 = arith.constant 0 : index
    %10 = vector.load %arg1[%c0_19, %c0_20] : memref<256x8xf32, #tpu.memory_space<vmem>>, vector<256x8xf32>
    %11 = arith.truncf %10 : vector<256x8xf32> to vector<256x8xbf16>
    %cst = arith.constant dense<0.000000e+00> : vector<50x256xf32>
    %12 = tpu.matmul %0, %11, %cst {dimension_numbers = #tpu.dot_dimension_numbers<[1], [1], [0], [0], [0, 0, 1, 0], [], []>} : vector<50x8xbf16>, vector<256x8xbf16>, vector<50x256xf32> -> vector<50x256xf32>
    %13 = vector.broadcast %5 : vector<50x1xf32> to vector<50x256xf32>
    %14 = arith.addf %12, %13 : vector<50x256xf32>
    %15 = arith.truncf %14 : vector<50x256xf32> to vector<50x256xbf16>
    %cst_21 = arith.constant 1.195310e+00 : bf16
    %16 = vector.broadcast %cst_21 : bf16 to vector<50x256xbf16>
    %17 = arith.mulf %16, %15 : vector<50x256xbf16>
    %cst_22 = arith.constant 1.593750e+00 : bf16
    %18 = vector.broadcast %cst_22 : bf16 to vector<50x256xbf16>
    %19 = arith.addf %17, %18 : vector<50x256xbf16>
    %20 = arith.mulf %19, %15 : vector<50x256xbf16>
    %cst_23 = arith.constant 5.000000e-01 : bf16
    %21 = vector.broadcast %cst_23 : bf16 to vector<50x256xbf16>
    %22 = arith.addf %20, %21 : vector<50x256xbf16>
    %23 = arith.mulf %22, %15 : vector<50x256xbf16>
    %cst_24 = arith.constant 2.185060e-02 : bf16
    %24 = vector.broadcast %cst_24 : bf16 to vector<50x256xbf16>
    %25 = arith.addf %23, %24 : vector<50x256xbf16>
    %cst_25 = arith.constant 2.390630e+00 : bf16
    %26 = vector.broadcast %cst_25 : bf16 to vector<50x256xbf16>
    %27 = arith.mulf %26, %15 : vector<50x256xbf16>
    %28 = arith.mulf %27, %15 : vector<50x256xbf16>
    %cst_26 = arith.constant 1.000000e+00 : bf16
    %29 = vector.broadcast %cst_26 : bf16 to vector<50x256xbf16>
    %30 = arith.addf %28, %29 : vector<50x256xbf16>
    %31 = arith.extf %30 : vector<50x256xbf16> to vector<50x256xf32>
    %32 = tpu.reciprocal %31 {approx = true} : vector<50x256xf32> -> vector<50x256xf32>
    %33 = arith.truncf %32 : vector<50x256xf32> to vector<50x256xbf16>
    %34 = arith.mulf %25, %33 : vector<50x256xbf16>
    %cst_27 = arith.constant dense<0.000000e+00> : vector<50x256xf32>
    %35 = tpu.matmul %1, %34, %cst_27 {dimension_numbers = #tpu.dot_dimension_numbers<[1], [0], [0], [1], [0, 0, 1, 1], [], []>} : vector<50x50xbf16>, vector<50x256xbf16>, vector<50x256xf32> -> vector<50x256xf32>
    %36 = vector.broadcast %6 : vector<50x1xf32> to vector<50x256xf32>
    %37 = arith.addf %35, %36 : vector<50x256xf32>
    %38 = arith.truncf %37 : vector<50x256xf32> to vector<50x256xbf16>
    %cst_28 = arith.constant 1.195310e+00 : bf16
    %39 = vector.broadcast %cst_28 : bf16 to vector<50x256xbf16>
    %40 = arith.mulf %39, %38 : vector<50x256xbf16>
    %cst_29 = arith.constant 1.593750e+00 : bf16
    %41 = vector.broadcast %cst_29 : bf16 to vector<50x256xbf16>
    %42 = arith.addf %40, %41 : vector<50x256xbf16>
    %43 = arith.mulf %42, %38 : vector<50x256xbf16>
    %cst_30 = arith.constant 5.000000e-01 : bf16
    %44 = vector.broadcast %cst_30 : bf16 to vector<50x256xbf16>
    %45 = arith.addf %43, %44 : vector<50x256xbf16>
    %46 = arith.mulf %45, %38 : vector<50x256xbf16>
    %cst_31 = arith.constant 2.185060e-02 : bf16
    %47 = vector.broadcast %cst_31 : bf16 to vector<50x256xbf16>
    %48 = arith.addf %46, %47 : vector<50x256xbf16>
    %cst_32 = arith.constant 2.390630e+00 : bf16
    %49 = vector.broadcast %cst_32 : bf16 to vector<50x256xbf16>
    %50 = arith.mulf %49, %38 : vector<50x256xbf16>
    %51 = arith.mulf %50, %38 : vector<50x256xbf16>
    %cst_33 = arith.constant 1.000000e+00 : bf16
    %52 = vector.broadcast %cst_33 : bf16 to vector<50x256xbf16>
    %53 = arith.addf %51, %52 : vector<50x256xbf16>
    %54 = arith.extf %53 : vector<50x256xbf16> to vector<50x256xf32>
    %55 = tpu.reciprocal %54 {approx = true} : vector<50x256xf32> -> vector<50x256xf32>
    %56 = arith.truncf %55 : vector<50x256xf32> to vector<50x256xbf16>
    %57 = arith.mulf %48, %56 : vector<50x256xbf16>
    %cst_34 = arith.constant dense<0.000000e+00> : vector<50x256xf32>
    %58 = tpu.matmul %2, %57, %cst_34 {dimension_numbers = #tpu.dot_dimension_numbers<[1], [0], [0], [1], [0, 0, 1, 1], [], []>} : vector<50x50xbf16>, vector<50x256xbf16>, vector<50x256xf32> -> vector<50x256xf32>
    %59 = vector.broadcast %7 : vector<50x1xf32> to vector<50x256xf32>
    %60 = arith.addf %58, %59 : vector<50x256xf32>
    %61 = arith.truncf %60 : vector<50x256xf32> to vector<50x256xbf16>
    %cst_35 = arith.constant 1.195310e+00 : bf16
    %62 = vector.broadcast %cst_35 : bf16 to vector<50x256xbf16>
    %63 = arith.mulf %62, %61 : vector<50x256xbf16>
    %cst_36 = arith.constant 1.593750e+00 : bf16
    %64 = vector.broadcast %cst_36 : bf16 to vector<50x256xbf16>
    %65 = arith.addf %63, %64 : vector<50x256xbf16>
    %66 = arith.mulf %65, %61 : vector<50x256xbf16>
    %cst_37 = arith.constant 5.000000e-01 : bf16
    %67 = vector.broadcast %cst_37 : bf16 to vector<50x256xbf16>
    %68 = arith.addf %66, %67 : vector<50x256xbf16>
    %69 = arith.mulf %68, %61 : vector<50x256xbf16>
    %cst_38 = arith.constant 2.185060e-02 : bf16
    %70 = vector.broadcast %cst_38 : bf16 to vector<50x256xbf16>
    %71 = arith.addf %69, %70 : vector<50x256xbf16>
    %cst_39 = arith.constant 2.390630e+00 : bf16
    %72 = vector.broadcast %cst_39 : bf16 to vector<50x256xbf16>
    %73 = arith.mulf %72, %61 : vector<50x256xbf16>
    %74 = arith.mulf %73, %61 : vector<50x256xbf16>
    %cst_40 = arith.constant 1.000000e+00 : bf16
    %75 = vector.broadcast %cst_40 : bf16 to vector<50x256xbf16>
    %76 = arith.addf %74, %75 : vector<50x256xbf16>
    %77 = arith.extf %76 : vector<50x256xbf16> to vector<50x256xf32>
    %78 = tpu.reciprocal %77 {approx = true} : vector<50x256xf32> -> vector<50x256xf32>
    %79 = arith.truncf %78 : vector<50x256xf32> to vector<50x256xbf16>
    %80 = arith.mulf %71, %79 : vector<50x256xbf16>
    %cst_41 = arith.constant dense<0.000000e+00> : vector<50x256xf32>
    %81 = tpu.matmul %3, %80, %cst_41 {dimension_numbers = #tpu.dot_dimension_numbers<[1], [0], [0], [1], [0, 0, 1, 1], [], []>} : vector<50x50xbf16>, vector<50x256xbf16>, vector<50x256xf32> -> vector<50x256xf32>
    %82 = vector.broadcast %8 : vector<50x1xf32> to vector<50x256xf32>
    %83 = arith.addf %81, %82 : vector<50x256xf32>
    %84 = arith.truncf %83 : vector<50x256xf32> to vector<50x256xbf16>
    %cst_42 = arith.constant 1.195310e+00 : bf16
    %85 = vector.broadcast %cst_42 : bf16 to vector<50x256xbf16>
    %86 = arith.mulf %85, %84 : vector<50x256xbf16>
    %cst_43 = arith.constant 1.593750e+00 : bf16
    %87 = vector.broadcast %cst_43 : bf16 to vector<50x256xbf16>
    %88 = arith.addf %86, %87 : vector<50x256xbf16>
    %89 = arith.mulf %88, %84 : vector<50x256xbf16>
    %cst_44 = arith.constant 5.000000e-01 : bf16
    %90 = vector.broadcast %cst_44 : bf16 to vector<50x256xbf16>
    %91 = arith.addf %89, %90 : vector<50x256xbf16>
    %92 = arith.mulf %91, %84 : vector<50x256xbf16>
    %cst_45 = arith.constant 2.185060e-02 : bf16
    %93 = vector.broadcast %cst_45 : bf16 to vector<50x256xbf16>
    %94 = arith.addf %92, %93 : vector<50x256xbf16>
    %cst_46 = arith.constant 2.390630e+00 : bf16
    %95 = vector.broadcast %cst_46 : bf16 to vector<50x256xbf16>
    %96 = arith.mulf %95, %84 : vector<50x256xbf16>
    %97 = arith.mulf %96, %84 : vector<50x256xbf16>
    %cst_47 = arith.constant 1.000000e+00 : bf16
    %98 = vector.broadcast %cst_47 : bf16 to vector<50x256xbf16>
    %99 = arith.addf %97, %98 : vector<50x256xbf16>
    %100 = arith.extf %99 : vector<50x256xbf16> to vector<50x256xf32>
    %101 = tpu.reciprocal %100 {approx = true} : vector<50x256xf32> -> vector<50x256xf32>
    %102 = arith.truncf %101 : vector<50x256xf32> to vector<50x256xbf16>
    %103 = arith.mulf %94, %102 : vector<50x256xbf16>
    %cst_48 = arith.constant dense<0.000000e+00> : vector<1x256xf32>
    %104 = tpu.matmul %4, %103, %cst_48 {dimension_numbers = #tpu.dot_dimension_numbers<[1], [0], [0], [1], [0, 0, 1, 1], [], []>} : vector<1x50xbf16>, vector<50x256xbf16>, vector<1x256xf32> -> vector<1x256xf32>
    %105 = vector.broadcast %9 : vector<1x1xf32> to vector<1x256xf32>
    %106 = arith.addf %104, %105 : vector<1x256xf32>
    %c0_49 = arith.constant 0 : index
    %c0_50 = arith.constant 0 : index
    %107 = vector.load %arg12[%c0_49, %c0_50] : memref<1x256xf32, #tpu.memory_space<vmem>>, vector<1x256xf32>
    tpu.vector_store %arg12[%c0_49, %c0_50], %106 {strides = array<i32>} : memref<1x256xf32, #tpu.memory_space<vmem>>, vector<1x256xf32>,
    return
  }
  func.func @transform_0(%arg0: i32) -> (i32, i32) {
    %c0_i32 = arith.constant 0 : i32
    %c0_i32_0 = arith.constant 0 : i32
    return %arg0, %c0_i32 : i32, i32
  }
  func.func @transform_1(%arg0: i32) -> (i32, i32) {
    %c0_i32 = arith.constant 0 : i32
    %c0_i32_0 = arith.constant 0 : i32
    %c0_i32_1 = arith.constant 0 : i32
    return %c0_i32, %c0_i32_0 : i32, i32
  }
  func.func @transform_2(%arg0: i32) -> (i32, i32) {
    %c0_i32 = arith.constant 0 : i32
    %c0_i32_0 = arith.constant 0 : i32
    %c0_i32_1 = arith.constant 0 : i32
    return %c0_i32, %c0_i32_0 : i32, i32
  }
  func.func @transform_3(%arg0: i32) -> (i32, i32) {
    %c0_i32 = arith.constant 0 : i32
    %c0_i32_0 = arith.constant 0 : i32
    %c0_i32_1 = arith.constant 0 : i32
    return %c0_i32, %c0_i32_0 : i32, i32
  }
  func.func @transform_4(%arg0: i32) -> (i32, i32) {
    %c0_i32 = arith.constant 0 : i32
    %c0_i32_0 = arith.constant 0 : i32
    %c0_i32_1 = arith.constant 0 : i32
    return %c0_i32, %c0_i32_0 : i32, i32
  }
  func.func @transform_5(%arg0: i32) -> (i32, i32) {
    %c0_i32 = arith.constant 0 : i32
    %c0_i32_0 = arith.constant 0 : i32
    %c0_i32_1 = arith.constant 0 : i32
    return %c0_i32, %c0_i32_0 : i32, i32
  }
  func.func @transform_6(%arg0: i32) -> (i32, i32) {
    %c0_i32 = arith.constant 0 : i32
    %c0_i32_0 = arith.constant 0 : i32
    %c0_i32_1 = arith.constant 0 : i32
    return %c0_i32, %c0_i32_0 : i32, i32
  }
  func.func @transform_7(%arg0: i32) -> (i32, i32) {
    %c0_i32 = arith.constant 0 : i32
    %c0_i32_0 = arith.constant 0 : i32
    %c0_i32_1 = arith.constant 0 : i32
    return %c0_i32, %c0_i32_0 : i32, i32
  }
  func.func @transform_8(%arg0: i32) -> (i32, i32) {
    %c0_i32 = arith.constant 0 : i32
    %c0_i32_0 = arith.constant 0 : i32
    %c0_i32_1 = arith.constant 0 : i32
    return %c0_i32, %c0_i32_0 : i32, i32
  }
  func.func @transform_9(%arg0: i32) -> (i32, i32) {
    %c0_i32 = arith.constant 0 : i32
    %c0_i32_0 = arith.constant 0 : i32
    %c0_i32_1 = arith.constant 0 : i32
    return %c0_i32, %c0_i32_0 : i32, i32
  }
  func.func @transform_10(%arg0: i32) -> (i32, i32) {
    %c0_i32 = arith.constant 0 : i32
    %c0_i32_0 = arith.constant 0 : i32
    %c0_i32_1 = arith.constant 0 : i32
    return %c0_i32, %c0_i32_0 : i32, i32
  }
  func.func @transform_11(%arg0: i32) -> (i32, i32) {
    %c0_i32 = arith.constant 0 : i32
    %c0_i32_0 = arith.constant 0 : i32
    return %c0_i32, %arg0 : i32, i32
  }
}

</mosaic_0001>

<llo_original>
// kernel: tpu_custom_call.1
$region0: #{tpu_custom_call.1}
  #allocation0 [shape = 'u32[]', space=smem, size = 0x4, offset = 0x4, fixed_abs, tag = 'smem constant byte address 0x4 - core index']
  #allocation1 [shape = 'u32[144,128]{1,0:T(1,128)}', space=vmem, size = 0x12000, scoped, tag = 'internal scratch']
  #allocation2 [shape = 'f32[1,1]{1,0:T(1,128)S(1)}', space=vmem, size = 0x200, scoped, tag = 'scoped memory for tpu_custom_call.1']
  %s0 = inlined_call_operand.vmem [shape: f32[64,8], index: 0, kind: input, shape index: {}]
  %s1 = inlined_call_operand.vmem [shape: bf16[50,8], index: 1, kind: input, shape index: {}]
  %s2 = inlined_call_operand.vmem [shape: f32[50,1], index: 2, kind: input, shape index: {}]
  %s3 = inlined_call_operand.vmem [shape: bf16[50,50], index: 3, kind: input, shape index: {}]
  %s4 = inlined_call_operand.vmem [shape: f32[50,1], index: 4, kind: input, shape index: {}]
  %s5 = inlined_call_operand.vmem [shape: bf16[50,50], index: 5, kind: input, shape index: {}]
  %s6 = inlined_call_operand.vmem [shape: f32[50,1], index: 6, kind: input, shape index: {}]
  %s7 = inlined_call_operand.vmem [shape: bf16[50,50], index: 7, kind: input, shape index: {}]
  %s8 = inlined_call_operand.vmem [shape: f32[50,1], index: 8, kind: input, shape index: {}]
  %s9 = inlined_call_operand.vmem [shape: bf16[1,50], index: 9, kind: input, shape index: {}]
  %s10 = inlined_call_operand.<no memory space> [shape: f32[1,1], index: 10, kind: input, shape index: {}]
  %s11 = inlined_call_operand.hbm [shape: f32[1,64], index: 11, kind: output, shape index: {}]
  %s12 = sld [smem:[#allocation0]]
  $region54: #{tpu_custom_call.1} parent=0
    _
  %s14 = ssub.s32 1, %s12
  %s15 = scalar_select 0, %s14, %s12
  %v16 = vstv %s10
  %17 = vst [vmem:[#allocation2] sm:$0x1] %v16
  $region1: #{tpu_custom_call.1} parent=0
    #allocation3 [shape = 'u8[1024]{0}', space=vmem, size = 0x400, scoped, tag = 'output window, operand 0, single buffered']
    #allocation4 [shape = 's32[1]{0}', space=sflag, size = 0x4, scoped, tag = 'scoped memory for tpu_custom_call.1']
    %18 = vsyncpa [#allocation4], 0
    // Predicated region
    $region2: #{tpu_custom_call.1} parent=1 // pred_check
      _
    $region3: #{tpu_custom_call.1} parent=1 // pred_check_branch
      %20 = sbr.rel (0) target = $region5
    $region4: #{tpu_custom_call.1} parent=1 // pred_region
      _
    $region5: #{tpu_custom_call.1} parent=1 // pred_fallthru
      _
    // Predicated region
    $region6: #{tpu_custom_call.1} parent=1 // pred_check
      _
    $region7: #{tpu_custom_call.1} parent=1 // pred_check_branch
      %22 = sbr.rel (0) target = $region9
    $region8: #{tpu_custom_call.1} parent=1 // pred_region
      _
    $region9: #{tpu_custom_call.1} parent=1 // pred_fallthru
      _
    // Predicated region
    $region10: #{tpu_custom_call.1} parent=1 // pred_check
      _
    $region11: #{tpu_custom_call.1} parent=1 // pred_check_branch
      %24 = sbr.rel (0) target = $region13
    $region12: #{tpu_custom_call.1} parent=1 // pred_region
      _
    $region13: #{tpu_custom_call.1} parent=1 // pred_fallthru
      _
    // Predicated region
    $region14: #{tpu_custom_call.1} parent=1 // pred_check
      _
    $region15: #{tpu_custom_call.1} parent=1 // pred_check_branch
      %26 = sbr.rel (0) target = $region17
    $region16: #{tpu_custom_call.1} parent=1 // pred_region
      _
    $region17: #{tpu_custom_call.1} parent=1 // pred_fallthru
      _
    // Predicated region
    $region18: #{tpu_custom_call.1} parent=1 // pred_check
      _
    $region19: #{tpu_custom_call.1} parent=1 // pred_check_branch
      %28 = sbr.rel (0) target = $region21
    $region20: #{tpu_custom_call.1} parent=1 // pred_region
      _
    $region21: #{tpu_custom_call.1} parent=1 // pred_fallthru
      _
    // Predicated region
    $region22: #{tpu_custom_call.1} parent=1 // pred_check
      _
    $region23: #{tpu_custom_call.1} parent=1 // pred_check_branch
      %30 = sbr.rel (0) target = $region25
    $region24: #{tpu_custom_call.1} parent=1 // pred_region
      _
    $region25: #{tpu_custom_call.1} parent=1 // pred_fallthru
      _
    // Predicated region
    $region26: #{tpu_custom_call.1} parent=1 // pred_check
      _
    $region27: #{tpu_custom_call.1} parent=1 // pred_check_branch
      %32 = sbr.rel (0) target = $region29
    $region28: #{tpu_custom_call.1} parent=1 // pred_region
      _
    $region29: #{tpu_custom_call.1} parent=1 // pred_fallthru
      _
    // Predicated region
    $region30: #{tpu_custom_call.1} parent=1 // pred_check
      _
    $region31: #{tpu_custom_call.1} parent=1 // pred_check_branch
      %34 = sbr.rel (0) target = $region33
    $region32: #{tpu_custom_call.1} parent=1 // pred_region
      _
    $region33: #{tpu_custom_call.1} parent=1 // pred_fallthru
      _
    // Predicated region
    $region34: #{tpu_custom_call.1} parent=1 // pred_check
      _
    $region35: #{tpu_custom_call.1} parent=1 // pred_check_branch
      %36 = sbr.rel (0) target = $region37
    $region36: #{tpu_custom_call.1} parent=1 // pred_region
      _
    $region37: #{tpu_custom_call.1} parent=1 // pred_fallthru
      _
    // Predicated region
    $region38: #{tpu_custom_call.1} parent=1 // pred_check
      _
    $region39: #{tpu_custom_call.1} parent=1 // pred_check_branch
      %38 = sbr.rel (0) target = $region41
    $region40: #{tpu_custom_call.1} parent=1 // pred_region
      _
    $region41: #{tpu_custom_call.1} parent=1 // pred_fallthru
      _
    // Predicated region
    $region42: #{tpu_custom_call.1} parent=1 // pred_check
      _
    $region43: #{tpu_custom_call.1} parent=1 // pred_check_branch
      %40 = sbr.rel (0) target = $region45
    $region44: #{tpu_custom_call.1} parent=1 // pred_region
      _
    $region45: #{tpu_custom_call.1} parent=1 // pred_fallthru
      _
    %v48 = vld [vmem:[%s1] sm:$0xf]
    %v49 = vld [vmem:[%s1 + $0x4] sm:$0xf]
    %v50 = vld [vmem:[%s1 + $0x8] sm:$0xf]
    %v51 = vld [vmem:[%s1 + $0xc] sm:$0xf]
    %v52 = vld [vmem:[%s1 + $0x10] sm:$0xf]
    %v53 = vld [vmem:[%s1 + $0x14] sm:$0xf]
    %v54 = vld [vmem:[%s1 + $0x18] sm:$0x1]
    %v55 = vld [vmem:[%s3] sm:$0xf]
    %v56 = vld [vmem:[%s3 + $0x4] sm:$0xf]
    %v57 = vld [vmem:[%s3 + $0x8] sm:$0xf]
    %v58 = vld [vmem:[%s3 + $0xc] sm:$0xf]
    %v59 = vld [vmem:[%s3 + $0x10] sm:$0xf]
    %v60 = vld [vmem:[%s3 + $0x14] sm:$0xf]
    %v61 = vld [vmem:[%s3 + $0x18] sm:$0x1]
    %v62 = vld [vmem:[%s5] sm:$0xf]
    %v63 = vld [vmem:[%s5 + $0x4] sm:$0xf]
    %v64 = vld [vmem:[%s5 + $0x8] sm:$0xf]
    %v65 = vld [vmem:[%s5 + $0xc] sm:$0xf]
    %v66 = vld [vmem:[%s5 + $0x10] sm:$0xf]
    %v67 = vld [vmem:[%s5 + $0x14] sm:$0xf]
    %v68 = vld [vmem:[%s5 + $0x18] sm:$0x1]
    %v69 = vld [vmem:[%s7] sm:$0xf]
    %v70 = vld [vmem:[%s7 + $0x4] sm:$0xf]
    %v71 = vld [vmem:[%s7 + $0x8] sm:$0xf]
    %v72 = vld [vmem:[%s7 + $0xc] sm:$0xf]
    %v73 = vld [vmem:[%s7 + $0x10] sm:$0xf]
    %v74 = vld [vmem:[%s7 + $0x14] sm:$0xf]
    %v75 = vld [vmem:[%s7 + $0x18] sm:$0x1]
    %v76 = vld [vmem:[%s9] sm:$0x1]
    %v77 = vld [vmem:[%s2] sm:$0xff]
    %v78 = vld [vmem:[%s2 + $0x8] sm:$0xff]
    %v79 = vld [vmem:[%s2 + $0x10] sm:$0xff]
    %v80 = vld [vmem:[%s2 + $0x18] sm:$0xff]
    %v81 = vld [vmem:[%s2 + $0x20] sm:$0xff]
    %v82 = vld [vmem:[%s2 + $0x28] sm:$0xff]
    %v83 = vld [vmem:[%s2 + $0x30] sm:$0x3]
    %v84 = vld [vmem:[%s4] sm:$0xff]
    %v85 = vld [vmem:[%s4 + $0x8] sm:$0xff]
    %v86 = vld [vmem:[%s4 + $0x10] sm:$0xff]
    %v87 = vld [vmem:[%s4 + $0x18] sm:$0xff]
    %v88 = vld [vmem:[%s4 + $0x20] sm:$0xff]
    %v89 = vld [vmem:[%s4 + $0x28] sm:$0xff]
    %v90 = vld [vmem:[%s4 + $0x30] sm:$0x3]
    %v91 = vld [vmem:[%s6] sm:$0xff]
    %v92 = vld [vmem:[%s6 + $0x8] sm:$0xff]
    %v93 = vld [vmem:[%s6 + $0x10] sm:$0xff]
    %v94 = vld [vmem:[%s6 + $0x18] sm:$0xff]
    %v95 = vld [vmem:[%s6 + $0x20] sm:$0xff]
    %v96 = vld [vmem:[%s6 + $0x28] sm:$0xff]
    %v97 = vld [vmem:[%s6 + $0x30] sm:$0x3]
    %v98 = vld [vmem:[%s8] sm:$0xff]
    %v99 = vld [vmem:[%s8 + $0x8] sm:$0xff]
    %v100 = vld [vmem:[%s8 + $0x10] sm:$0xff]
    %v101 = vld [vmem:[%s8 + $0x18] sm:$0xff]
    %v102 = vld [vmem:[%s8 + $0x20] sm:$0xff]
    %v103 = vld [vmem:[%s8 + $0x28] sm:$0xff]
    %v104 = vld [vmem:[%s8 + $0x30] sm:$0x3]
    %v105 = vld [vmem:[#allocation2] sm:$0x1]
    %v106 = vld [vmem:[%s0] sm:$0xff]
    %v107 = vld [vmem:[%s0 + $0x8] sm:$0xff]
    %v108 = vld [vmem:[%s0 + $0x10] sm:$0xff]
    %v109 = vld [vmem:[%s0 + $0x18] sm:$0xff]
    %v110 = vld [vmem:[%s0 + $0x20] sm:$0xff]
    %v111 = vld [vmem:[%s0 + $0x28] sm:$0xff]
    %v112 = vld [vmem:[%s0 + $0x30] sm:$0xff]
    %v113 = vld [vmem:[%s0 + $0x38] sm:$0xff]
    %v114 = vld [vmem:[%s0 + $0x40] sm:$0xff]
    %v115 = vld [vmem:[%s0 + $0x48] sm:$0xff]
    %v116 = vld [vmem:[%s0 + $0x50] sm:$0xff]
    %v117 = vld [vmem:[%s0 + $0x58] sm:$0xff]
    %v118 = vld [vmem:[%s0 + $0x60] sm:$0xff]
    %v119 = vld [vmem:[%s0 + $0x68] sm:$0xff]
    %v120 = vld [vmem:[%s0 + $0x70] sm:$0xff]
    %v121 = vld [vmem:[%s0 + $0x78] sm:$0xff]
    %v122 = vld [vmem:[%s0 + $0x80] sm:$0xff]
    %v123 = vld [vmem:[%s0 + $0x88] sm:$0xff]
    %v124 = vld [vmem:[%s0 + $0x90] sm:$0xff]
    %v125 = vld [vmem:[%s0 + $0x98] sm:$0xff]
    %v126 = vld [vmem:[%s0 + $0xa0] sm:$0xff]
    %v127 = vld [vmem:[%s0 + $0xa8] sm:$0xff]
    %v128 = vld [vmem:[%s0 + $0xb0] sm:$0xff]
    %v129 = vld [vmem:[%s0 + $0xb8] sm:$0xff]
    %v130 = vld [vmem:[%s0 + $0xc0] sm:$0xff]
    %v131 = vld [vmem:[%s0 + $0xc8] sm:$0xff]
    %v132 = vld [vmem:[%s0 + $0xd0] sm:$0xff]
    %v133 = vld [vmem:[%s0 + $0xd8] sm:$0xff]
    %v134 = vld [vmem:[%s0 + $0xe0] sm:$0xff]
    %v135 = vld [vmem:[%s0 + $0xe8] sm:$0xff]
    %v136 = vld [vmem:[%s0 + $0xf0] sm:$0xff]
    %v137 = vld [vmem:[%s0 + $0xf8] sm:$0xff]
    %v138 = vpack.c.bf16 %v107, %v106
    %v139 = vpack.c.bf16 %v109, %v108
    %v140 = vpack.c.bf16 %v111, %v110
    %v141 = vpack.c.bf16 %v113, %v112
    %v142 = vpack.c.bf16 %v115, %v114
    %v143 = vpack.c.bf16 %v117, %v116
    %v144 = vpack.c.bf16 %v119, %v118
    %v145 = vpack.c.bf16 %v121, %v120
    %v146 = vpack.c.bf16 %v123, %v122
    %v147 = vpack.c.bf16 %v125, %v124
    %v148 = vpack.c.bf16 %v127, %v126
    %v149 = vpack.c.bf16 %v129, %v128
    %v150 = vpack.c.bf16 %v131, %v130
    %v151 = vpack.c.bf16 %v133, %v132
    %v152 = vpack.c.bf16 %v135, %v134
    %v153 = vpack.c.bf16 %v137, %v136
    %155 = vset.pattern.permute.xlu0 0
    %156 = vperm.xlu0 %155, %v77
    %v157 = vpop.permute.xlu0 %156
    %160 = vset.pattern.permute.xlu0 0
    %161 = vperm.xlu0 %160, %v78
    %v162 = vpop.permute.xlu0 %161
    %165 = vset.pattern.permute.xlu0 0
    %166 = vperm.xlu0 %165, %v79
    %v167 = vpop.permute.xlu0 %166
    %170 = vset.pattern.permute.xlu0 0
    %171 = vperm.xlu0 %170, %v80
    %v172 = vpop.permute.xlu0 %171
    %175 = vset.pattern.permute.xlu0 0
    %176 = vperm.xlu0 %175, %v81
    %v177 = vpop.permute.xlu0 %176
    %180 = vset.pattern.permute.xlu0 0
    %181 = vperm.xlu0 %180, %v82
    %v182 = vpop.permute.xlu0 %181
    %185 = vset.pattern.permute.xlu0 0
    %186 = vperm.xlu0 %185, %v83
    %v187 = vpop.permute.xlu0 %186
    %v196 = vunpack.c.l.b16 %v48
    %v197 = vunpack.c.l.b16 %v49
    %v198 = vunpack.c.l.b16 %v50
    %v199 = vunpack.c.l.b16 %v51
    %v200 = vunpack.c.l.b16 %v52
    %v201 = vunpack.c.l.b16 %v53
    %v202 = vunpack.c.l.b16 %v54
    %v203 = vpack.c.b16 %v197, %v196
    %v204 = vpack.c.b16 %v199, %v198
    %v205 = vpack.c.b16 %v201, %v200
    %v206 = vpack.c.b16 %v202, %v202
    %vm207 = vcmask 64512
    %v209 = vsel %vm207, %v203, 0
    %v212 = vsel %vm207, %v204, 0
    %v215 = vsel %vm207, %v205, 0
    %v218 = vsel %vm207, %v206, 0
    %v221 = vsel %vm207, %v138, 0
    %v224 = vsel %vm207, %v139, 0
    %v227 = vsel %vm207, %v140, 0
    %v230 = vsel %vm207, %v141, 0
    %v233 = vsel %vm207, %v142, 0
    %v236 = vsel %vm207, %v143, 0
    %v239 = vsel %vm207, %v144, 0
    %v242 = vsel %vm207, %v145, 0
    %v245 = vsel %vm207, %v146, 0
    %v248 = vsel %vm207, %v147, 0
    %v251 = vsel %vm207, %v148, 0
    %v254 = vsel %vm207, %v149, 0
    %v257 = vsel %vm207, %v150, 0
    %v260 = vsel %vm207, %v151, 0
    %v263 = vsel %vm207, %v152, 0
    %v266 = vsel %vm207, %v153, 0
    %268 = vmatprep.subr.bf16.mxu0 0
    %269 = vmatpush1.bf16.xpose.msra.mxu0 %v221
    %270 = vmatprep.subr.bf16.mxu0 0
    %271 = vmatpush1.bf16.xpose.msra.mxu0 %v224
    %272 = vmatprep.subr.bf16.mxu0 0
    %273 = vmatpush1.bf16.xpose.msra.mxu0 %v227
    %274 = vmatprep.subr.bf16.mxu0 0
    %275 = vmatpush1.bf16.xpose.msra.mxu0 %v230
    %276 = vmatprep.subr.bf16.mxu0 0
    %277 = vmatpush1.bf16.xpose.msra.mxu0 %v233
    %278 = vmatprep.subr.bf16.mxu0 0
    %279 = vmatpush1.bf16.xpose.msra.mxu0 %v236
    %280 = vmatprep.subr.bf16.mxu0 0
    %281 = vmatpush1.bf16.xpose.msra.mxu0 %v239
    %282 = vmatprep.subr.bf16.mxu0 0
    %283 = vmatpush1.bf16.xpose.msra.mxu0 %v242
    %284 = vmatprep.subr.bf16.mxu0 0
    %285 = vmatpush1.bf16.xpose.msra.mxu0 %v245
    %286 = vmatprep.subr.bf16.mxu0 0
    %287 = vmatpush1.bf16.xpose.msra.mxu0 %v248
    %288 = vmatprep.subr.bf16.mxu0 0
    %289 = vmatpush1.bf16.xpose.msra.mxu0 %v251
    %290 = vmatprep.subr.bf16.mxu0 0
    %291 = vmatpush1.bf16.xpose.msra.mxu0 %v254
    %292 = vmatprep.subr.bf16.mxu0 0
    %293 = vmatpush1.bf16.xpose.msra.mxu0 %v257
    %294 = vmatprep.subr.bf16.mxu0 0
    %295 = vmatpush1.bf16.xpose.msra.mxu0 %v260
    %296 = vmatprep.subr.bf16.mxu0 0
    %297 = vmatpush1.bf16.xpose.msra.mxu0 %v263
    %298 = vmatprep.subr.bf16.mxu0 0
    %299 = vmatpush1.bf16.xpose.msra.mxu0 %v266
    %300 = vmatprep.mubr.bf16.mxu0 0
    %301 = vmatmul.mubr.bf16.gmra.mrb[0].mxu0 %v209
    %v302 = vpop.f32.mrb[0].mxu0
    %v303 = vadd.f32 %v157, %v302
    %v304 = vpop.f32.mrb[0].mxu0
    %v305 = vadd.f32 %v157, %v304
    %v306 = vpop.f32.mrb[0].mxu0
    %v307 = vadd.f32 %v162, %v306
    %v308 = vpop.f32.mrb[0].mxu0
    %v309 = vadd.f32 %v162, %v308
    %310 = vmatprep.mubr.bf16.mxu0 0
    %311 = vmatmul.mubr.bf16.gmra.mrb[0].mxu0 %v212
    %v312 = vpop.f32.mrb[0].mxu0
    %v313 = vadd.f32 %v167, %v312
    %v314 = vpop.f32.mrb[0].mxu0
    %v315 = vadd.f32 %v167, %v314
    %v316 = vpop.f32.mrb[0].mxu0
    %v317 = vadd.f32 %v172, %v316
    %v318 = vpop.f32.mrb[0].mxu0
    %v319 = vadd.f32 %v172, %v318
    %320 = vmatprep.mubr.bf16.mxu0 0
    %321 = vmatmul.mubr.bf16.gmra.mrb[0].mxu0 %v215
    %v322 = vpop.f32.mrb[0].mxu0
    %v323 = vadd.f32 %v177, %v322
    %v324 = vpop.f32.mrb[0].mxu0
    %v325 = vadd.f32 %v177, %v324
    %v326 = vpop.f32.mrb[0].mxu0
    %v327 = vadd.f32 %v182, %v326
    %v328 = vpop.f32.mrb[0].mxu0
    %v329 = vadd.f32 %v182, %v328
    %330 = vmatprep.mubr.bf16.mxu0 0
    %331 = vmatmul.mubr.bf16.gmra.mrb[0].mxu0 %v218
    %v332 = vpop.f32.mrb[0].mxu0
    %v333 = vadd.f32 %v187, %v332
    %v334 = vpop.f32.mrb[0].mxu0
    %v335 = vadd.f32 %v187, %v334
    %v336 = vpop.f32.mrb[0].mxu0
    %v337 = vpop.f32.mrb[0].mxu0
    %338 = vdwg.mxu0
    %v339 = vpack.c.bf16 %v307, %v303
    %v340 = vpack.c.bf16 %v309, %v305
    %v341 = vpack.c.bf16 %v317, %v313
    %v342 = vpack.c.bf16 %v319, %v315
    %v343 = vpack.c.bf16 %v327, %v323
    %v344 = vpack.c.bf16 %v329, %v325
    %v345 = vpack.c.bf16 %v333, %v333
    %v346 = vpack.c.bf16 %v335, %v335
    %v347 = vmul.bf16 %v339, 1067007897
    %v348 = vmul.bf16 %v340, 1067007897
    %v349 = vmul.bf16 %v341, 1067007897
    %v350 = vmul.bf16 %v342, 1067007897
    %v351 = vmul.bf16 %v343, 1067007897
    %v352 = vmul.bf16 %v344, 1067007897
    %v353 = vmul.bf16 %v345, 1067007897
    %v354 = vmul.bf16 %v346, 1067007897
    %v355 = vadd.bf16 %v347, 1070350284
    %v356 = vadd.bf16 %v348, 1070350284
    %v357 = vadd.bf16 %v349, 1070350284
    %v358 = vadd.bf16 %v350, 1070350284
    %v359 = vadd.bf16 %v351, 1070350284
    %v360 = vadd.bf16 %v352, 1070350284
    %v361 = vadd.bf16 %v353, 1070350284
    %v362 = vadd.bf16 %v354, 1070350284
    %v363 = vmul.bf16 %v355, %v339
    %v364 = vmul.bf16 %v356, %v340
    %v365 = vmul.bf16 %v357, %v341
    %v366 = vmul.bf16 %v358, %v342
    %v367 = vmul.bf16 %v359, %v343
    %v368 = vmul.bf16 %v360, %v344
    %v369 = vmul.bf16 %v361, %v345
    %v370 = vmul.bf16 %v362, %v346
    %v371 = vadd.bf16 %v363, 1056980736
    %v372 = vadd.bf16 %v364, 1056980736
    %v373 = vadd.bf16 %v365, 1056980736
    %v374 = vadd.bf16 %v366, 1056980736
    %v375 = vadd.bf16 %v367, 1056980736
    %v376 = vadd.bf16 %v368, 1056980736
    %v377 = vadd.bf16 %v369, 1056980736
    %v378 = vadd.bf16 %v370, 1056980736
    %v379 = vmul.bf16 %v371, %v339
    %v380 = vmul.bf16 %v372, %v340
    %v381 = vmul.bf16 %v373, %v341
    %v382 = vmul.bf16 %v374, %v342
    %v383 = vmul.bf16 %v375, %v343
    %v384 = vmul.bf16 %v376, %v344
    %v385 = vmul.bf16 %v377, %v345
    %v386 = vmul.bf16 %v378, %v346
    %v387 = vadd.bf16 %v379, 1018379443
    %v388 = vadd.bf16 %v380, 1018379443
    %v389 = vadd.bf16 %v381, 1018379443
    %v390 = vadd.bf16 %v382, 1018379443
    %v391 = vadd.bf16 %v383, 1018379443
    %v392 = vadd.bf16 %v384, 1018379443
    %v393 = vadd.bf16 %v385, 1018379443
    %v394 = vadd.bf16 %v386, 1018379443
    %v395 = vmul.bf16 %v339, 1075396633
    %v396 = vmul.bf16 %v340, 1075396633
    %v397 = vmul.bf16 %v341, 1075396633
    %v398 = vmul.bf16 %v342, 1075396633
    %v399 = vmul.bf16 %v343, 1075396633
    %v400 = vmul.bf16 %v344, 1075396633
    %v401 = vmul.bf16 %v345, 1075396633
    %v402 = vmul.bf16 %v346, 1075396633
    %v403 = vmul.bf16 %v395, %v339
    %v404 = vmul.bf16 %v396, %v340
    %v405 = vmul.bf16 %v397, %v341
    %v406 = vmul.bf16 %v398, %v342
    %v407 = vmul.bf16 %v399, %v343
    %v408 = vmul.bf16 %v400, %v344
    %v409 = vmul.bf16 %v401, %v345
    %v410 = vmul.bf16 %v402, %v346
    %v411 = vadd.bf16 %v403, 1065369472
    %v412 = vadd.bf16 %v404, 1065369472
    %v413 = vadd.bf16 %v405, 1065369472
    %v414 = vadd.bf16 %v406, 1065369472
    %v415 = vadd.bf16 %v407, 1065369472
    %v416 = vadd.bf16 %v408, 1065369472
    %v417 = vadd.bf16 %v409, 1065369472
    %v418 = vadd.bf16 %v410, 1065369472
    %v419 = vunpack.c.l.bf16 %v411
    %v420 = vunpack.c.l.bf16 %v412
    %v421 = vunpack.c.h.bf16 %v411
    %v422 = vunpack.c.h.bf16 %v412
    %v423 = vunpack.c.l.bf16 %v413
    %v424 = vunpack.c.l.bf16 %v414
    %v425 = vunpack.c.h.bf16 %v413
    %v426 = vunpack.c.h.bf16 %v414
    %v427 = vunpack.c.l.bf16 %v415
    %v428 = vunpack.c.l.bf16 %v416
    %v429 = vunpack.c.h.bf16 %v415
    %v430 = vunpack.c.h.bf16 %v416
    %v431 = vunpack.c.l.bf16 %v417
    %v432 = vunpack.c.l.bf16 %v418
    %v433 = vrcp.pop %v419
    %v434 = vrcp.pop %v420
    %v435 = vrcp.pop %v421
    %v436 = vrcp.pop %v422
    %v437 = vrcp.pop %v423
    %v438 = vrcp.pop %v424
    %v439 = vrcp.pop %v425
    %v440 = vrcp.pop %v426
    %v441 = vrcp.pop %v427
    %v442 = vrcp.pop %v428
    %v443 = vrcp.pop %v429
    %v444 = vrcp.pop %v430
    %v445 = vrcp.pop %v431
    %v446 = vrcp.pop %v432
    %v447 = vpack.c.bf16 %v435, %v433
    %v448 = vpack.c.bf16 %v436, %v434
    %v449 = vpack.c.bf16 %v439, %v437
    %v450 = vpack.c.bf16 %v440, %v438
    %v451 = vpack.c.bf16 %v443, %v441
    %v452 = vpack.c.bf16 %v444, %v442
    %v453 = vpack.c.bf16 %v445, %v445
    %v454 = vpack.c.bf16 %v446, %v446
    %v455 = vmul.bf16 %v387, %v447
    %v456 = vmul.bf16 %v388, %v448
    %v457 = vmul.bf16 %v389, %v449
    %v458 = vmul.bf16 %v390, %v450
    %v459 = vmul.bf16 %v391, %v451
    %v460 = vmul.bf16 %v392, %v452
    %v461 = vmul.bf16 %v393, %v453
    %v462 = vmul.bf16 %v394, %v454
    %464 = vset.pattern.permute.xlu0 0
    %465 = vperm.xlu0 %464, %v84
    %v466 = vpop.permute.xlu0 %465
    %469 = vset.pattern.permute.xlu0 0
    %470 = vperm.xlu0 %469, %v85
    %v471 = vpop.permute.xlu0 %470
    %474 = vset.pattern.permute.xlu0 0
    %475 = vperm.xlu0 %474, %v86
    %v476 = vpop.permute.xlu0 %475
    %479 = vset.pattern.permute.xlu0 0
    %480 = vperm.xlu0 %479, %v87
    %v481 = vpop.permute.xlu0 %480
    %484 = vset.pattern.permute.xlu0 0
    %485 = vperm.xlu0 %484, %v88
    %v486 = vpop.permute.xlu0 %485
    %489 = vset.pattern.permute.xlu0 0
    %490 = vperm.xlu0 %489, %v89
    %v491 = vpop.permute.xlu0 %490
    %494 = vset.pattern.permute.xlu0 0
    %495 = vperm.xlu0 %494, %v90
    %v496 = vpop.permute.xlu0 %495
    %v505 = vunpack.c.l.b16 %v55
    %v506 = vunpack.c.l.b16 %v56
    %v507 = vunpack.c.l.b16 %v57
    %v508 = vunpack.c.l.b16 %v58
    %v509 = vunpack.c.l.b16 %v59
    %v510 = vunpack.c.l.b16 %v60
    %v511 = vunpack.c.l.b16 %v61
    %v512 = vpack.c.b16 %v506, %v505
    %v513 = vpack.c.b16 %v508, %v507
    %v514 = vpack.c.b16 %v510, %v509
    %v515 = vpack.c.b16 %v511, %v511
    %vm516 = vcmask 408576
    %v518 = vsel %vm516, %v512, 0
    %v521 = vsel %vm516, %v513, 0
    %v524 = vsel %vm516, %v514, 0
    %v527 = vsel %vm516, %v515, 0
    %vm529 = vcmask 1040384
    %v531 = vsel %vm529, %v461, 0
    %v534 = vsel %vm529, %v462, 0
    %536 = vmatprep.subr.bf16.mxu0 %v456
    %537 = vmatpush1.bf16.msra.mxu0 %v455
    %538 = vmatprep.subr.bf16.mxu0 %v458
    %539 = vmatpush1.bf16.msra.mxu0 %v457
    %540 = vmatprep.subr.bf16.mxu0 %v460
    %541 = vmatpush1.bf16.msra.mxu0 %v459
    %542 = vmatprep.subr.bf16.mxu0 %v534
    %543 = vmatpush1.bf16.msra.mxu0 %v531
    %544 = vmatprep.subr.bf16.mxu0 0
    %545 = vmatpush1.bf16.msra.mxu0 0
    %546 = vmatprep.subr.bf16.mxu0 0
    %547 = vmatpush1.bf16.msra.mxu0 0
    %548 = vmatprep.subr.bf16.mxu0 0
    %549 = vmatpush1.bf16.msra.mxu0 0
    %550 = vmatprep.subr.bf16.mxu0 0
    %551 = vmatpush1.bf16.msra.mxu0 0
    %552 = vmatprep.subr.bf16.mxu0 0
    %553 = vmatpush1.bf16.msra.mxu0 0
    %554 = vmatprep.subr.bf16.mxu0 0
    %555 = vmatpush1.bf16.msra.mxu0 0
    %556 = vmatprep.subr.bf16.mxu0 0
    %557 = vmatpush1.bf16.msra.mxu0 0
    %558 = vmatprep.subr.bf16.mxu0 0
    %559 = vmatpush1.bf16.msra.mxu0 0
    %560 = vmatprep.subr.bf16.mxu0 0
    %561 = vmatpush1.bf16.msra.mxu0 0
    %562 = vmatprep.subr.bf16.mxu0 0
    %563 = vmatpush1.bf16.msra.mxu0 0
    %564 = vmatprep.subr.bf16.mxu0 0
    %565 = vmatpush1.bf16.msra.mxu0 0
    %566 = vmatprep.subr.bf16.mxu0 0
    %567 = vmatpush1.bf16.msra.mxu0 0
    %568 = vmatprep.mubr.bf16.mxu0 0
    %569 = vmatmul.mubr.bf16.gmra.mrb[0].mxu0 %v518
    %v570 = vpop.f32.mrb[0].mxu0
    %v571 = vadd.f32 %v466, %v570
    %v572 = vpop.f32.mrb[0].mxu0
    %v573 = vadd.f32 %v466, %v572
    %v574 = vpop.f32.mrb[0].mxu0
    %v575 = vadd.f32 %v471, %v574
    %v576 = vpop.f32.mrb[0].mxu0
    %v577 = vadd.f32 %v471, %v576
    %578 = vmatprep.mubr.bf16.mxu0 0
    %579 = vmatmul.mubr.bf16.gmra.mrb[0].mxu0 %v521
    %v580 = vpop.f32.mrb[0].mxu0
    %v581 = vadd.f32 %v476, %v580
    %v582 = vpop.f32.mrb[0].mxu0
    %v583 = vadd.f32 %v476, %v582
    %v584 = vpop.f32.mrb[0].mxu0
    %v585 = vadd.f32 %v481, %v584
    %v586 = vpop.f32.mrb[0].mxu0
    %v587 = vadd.f32 %v481, %v586
    %588 = vmatprep.mubr.bf16.mxu0 0
    %589 = vmatmul.mubr.bf16.gmra.mrb[0].mxu0 %v524
    %v590 = vpop.f32.mrb[0].mxu0
    %v591 = vadd.f32 %v486, %v590
    %v592 = vpop.f32.mrb[0].mxu0
    %v593 = vadd.f32 %v486, %v592
    %v594 = vpop.f32.mrb[0].mxu0
    %v595 = vadd.f32 %v491, %v594
    %v596 = vpop.f32.mrb[0].mxu0
    %v597 = vadd.f32 %v491, %v596
    %598 = vmatprep.mubr.bf16.mxu0 0
    %599 = vmatmul.mubr.bf16.gmra.mrb[0].mxu0 %v527
    %v600 = vpop.f32.mrb[0].mxu0
    %v601 = vadd.f32 %v496, %v600
    %v602 = vpop.f32.mrb[0].mxu0
    %v603 = vadd.f32 %v496, %v602
    %v604 = vpop.f32.mrb[0].mxu0
    %v605 = vpop.f32.mrb[0].mxu0
    %606 = vdwg.mxu0
    %v607 = vpack.c.bf16 %v575, %v571
    %v608 = vpack.c.bf16 %v577, %v573
    %v609 = vpack.c.bf16 %v585, %v581
    %v610 = vpack.c.bf16 %v587, %v583
    %v611 = vpack.c.bf16 %v595, %v591
    %v612 = vpack.c.bf16 %v597, %v593
    %v613 = vpack.c.bf16 %v601, %v601
    %v614 = vpack.c.bf16 %v603, %v603
    %v615 = vmul.bf16 %v607, 1067007897
    %v616 = vmul.bf16 %v608, 1067007897
    %v617 = vmul.bf16 %v609, 1067007897
    %v618 = vmul.bf16 %v610, 1067007897
    %v619 = vmul.bf16 %v611, 1067007897
    %v620 = vmul.bf16 %v612, 1067007897
    %v621 = vmul.bf16 %v613, 1067007897
    %v622 = vmul.bf16 %v614, 1067007897
    %v623 = vadd.bf16 %v615, 1070350284
    %v624 = vadd.bf16 %v616, 1070350284
    %v625 = vadd.bf16 %v617, 1070350284
    %v626 = vadd.bf16 %v618, 1070350284
    %v627 = vadd.bf16 %v619, 1070350284
    %v628 = vadd.bf16 %v620, 1070350284
    %v629 = vadd.bf16 %v621, 1070350284
    %v630 = vadd.bf16 %v622, 1070350284
    %v631 = vmul.bf16 %v623, %v607
    %v632 = vmul.bf16 %v624, %v608
    %v633 = vmul.bf16 %v625, %v609
    %v634 = vmul.bf16 %v626, %v610
    %v635 = vmul.bf16 %v627, %v611
    %v636 = vmul.bf16 %v628, %v612
    %v637 = vmul.bf16 %v629, %v613
    %v638 = vmul.bf16 %v630, %v614
    %v639 = vadd.bf16 %v631, 1056980736
    %v640 = vadd.bf16 %v632, 1056980736
    %v641 = vadd.bf16 %v633, 1056980736
    %v642 = vadd.bf16 %v634, 1056980736
    %v643 = vadd.bf16 %v635, 1056980736
    %v644 = vadd.bf16 %v636, 1056980736
    %v645 = vadd.bf16 %v637, 1056980736
    %v646 = vadd.bf16 %v638, 1056980736
    %v647 = vmul.bf16 %v639, %v607
    %v648 = vmul.bf16 %v640, %v608
    %v649 = vmul.bf16 %v641, %v609
    %v650 = vmul.bf16 %v642, %v610
    %v651 = vmul.bf16 %v643, %v611
    %v652 = vmul.bf16 %v644, %v612
    %v653 = vmul.bf16 %v645, %v613
    %v654 = vmul.bf16 %v646, %v614
    %v655 = vadd.bf16 %v647, 1018379443
    %v656 = vadd.bf16 %v648, 1018379443
    %v657 = vadd.bf16 %v649, 1018379443
    %v658 = vadd.bf16 %v650, 1018379443
    %v659 = vadd.bf16 %v651, 1018379443
    %v660 = vadd.bf16 %v652, 1018379443
    %v661 = vadd.bf16 %v653, 1018379443
    %v662 = vadd.bf16 %v654, 1018379443
    %v663 = vmul.bf16 %v607, 1075396633
    %v664 = vmul.bf16 %v608, 1075396633
    %v665 = vmul.bf16 %v609, 1075396633
    %v666 = vmul.bf16 %v610, 1075396633
    %v667 = vmul.bf16 %v611, 1075396633
    %v668 = vmul.bf16 %v612, 1075396633
    %v669 = vmul.bf16 %v613, 1075396633
    %v670 = vmul.bf16 %v614, 1075396633
    %v671 = vmul.bf16 %v663, %v607
    %v672 = vmul.bf16 %v664, %v608
    %v673 = vmul.bf16 %v665, %v609
    %v674 = vmul.bf16 %v666, %v610
    %v675 = vmul.bf16 %v667, %v611
    %v676 = vmul.bf16 %v668, %v612
    %v677 = vmul.bf16 %v669, %v613
    %v678 = vmul.bf16 %v670, %v614
    %v679 = vadd.bf16 %v671, 1065369472
    %v680 = vadd.bf16 %v672, 1065369472
    %v681 = vadd.bf16 %v673, 1065369472
    %v682 = vadd.bf16 %v674, 1065369472
    %v683 = vadd.bf16 %v675, 1065369472
    %v684 = vadd.bf16 %v676, 1065369472
    %v685 = vadd.bf16 %v677, 1065369472
    %v686 = vadd.bf16 %v678, 1065369472
    %v687 = vunpack.c.l.bf16 %v679
    %v688 = vunpack.c.l.bf16 %v680
    %v689 = vunpack.c.h.bf16 %v679
    %v690 = vunpack.c.h.bf16 %v680
    %v691 = vunpack.c.l.bf16 %v681
    %v692 = vunpack.c.l.bf16 %v682
    %v693 = vunpack.c.h.bf16 %v681
    %v694 = vunpack.c.h.bf16 %v682
    %v695 = vunpack.c.l.bf16 %v683
    %v696 = vunpack.c.l.bf16 %v684
    %v697 = vunpack.c.h.bf16 %v683
    %v698 = vunpack.c.h.bf16 %v684
    %v699 = vunpack.c.l.bf16 %v685
    %v700 = vunpack.c.l.bf16 %v686
    %v701 = vrcp.pop %v687
    %v702 = vrcp.pop %v688
    %v703 = vrcp.pop %v689
    %v704 = vrcp.pop %v690
    %v705 = vrcp.pop %v691
    %v706 = vrcp.pop %v692
    %v707 = vrcp.pop %v693
    %v708 = vrcp.pop %v694
    %v709 = vrcp.pop %v695
    %v710 = vrcp.pop %v696
    %v711 = vrcp.pop %v697
    %v712 = vrcp.pop %v698
    %v713 = vrcp.pop %v699
    %v714 = vrcp.pop %v700
    %v715 = vpack.c.bf16 %v703, %v701
    %v716 = vpack.c.bf16 %v704, %v702
    %v717 = vpack.c.bf16 %v707, %v705
    %v718 = vpack.c.bf16 %v708, %v706
    %v719 = vpack.c.bf16 %v711, %v709
    %v720 = vpack.c.bf16 %v712, %v710
    %v721 = vpack.c.bf16 %v713, %v713
    %v722 = vpack.c.bf16 %v714, %v714
    %v723 = vmul.bf16 %v655, %v715
    %v724 = vmul.bf16 %v656, %v716
    %v725 = vmul.bf16 %v657, %v717
    %v726 = vmul.bf16 %v658, %v718
    %v727 = vmul.bf16 %v659, %v719
    %v728 = vmul.bf16 %v660, %v720
    %v729 = vmul.bf16 %v661, %v721
    %v730 = vmul.bf16 %v662, %v722
    %732 = vset.pattern.permute.xlu0 0
    %733 = vperm.xlu0 %732, %v91
    %v734 = vpop.permute.xlu0 %733
    %737 = vset.pattern.permute.xlu0 0
    %738 = vperm.xlu0 %737, %v92
    %v739 = vpop.permute.xlu0 %738
    %742 = vset.pattern.permute.xlu0 0
    %743 = vperm.xlu0 %742, %v93
    %v744 = vpop.permute.xlu0 %743
    %747 = vset.pattern.permute.xlu0 0
    %748 = vperm.xlu0 %747, %v94
    %v749 = vpop.permute.xlu0 %748
    %752 = vset.pattern.permute.xlu0 0
    %753 = vperm.xlu0 %752, %v95
    %v754 = vpop.permute.xlu0 %753
    %757 = vset.pattern.permute.xlu0 0
    %758 = vperm.xlu0 %757, %v96
    %v759 = vpop.permute.xlu0 %758
    %762 = vset.pattern.permute.xlu0 0
    %763 = vperm.xlu0 %762, %v97
    %v764 = vpop.permute.xlu0 %763
    %v773 = vunpack.c.l.b16 %v62
    %v774 = vunpack.c.l.b16 %v63
    %v775 = vunpack.c.l.b16 %v64
    %v776 = vunpack.c.l.b16 %v65
    %v777 = vunpack.c.l.b16 %v66
    %v778 = vunpack.c.l.b16 %v67
    %v779 = vunpack.c.l.b16 %v68
    %v780 = vpack.c.b16 %v774, %v773
    %v781 = vpack.c.b16 %v776, %v775
    %v782 = vpack.c.b16 %v778, %v777
    %v783 = vpack.c.b16 %v779, %v779
    %v785 = vsel %vm516, %v780, 0
    %v788 = vsel %vm516, %v781, 0
    %v791 = vsel %vm516, %v782, 0
    %v794 = vsel %vm516, %v783, 0
    %v797 = vsel %vm529, %v729, 0
    %v800 = vsel %vm529, %v730, 0
    %802 = vmatprep.subr.bf16.mxu0 %v724
    %803 = vmatpush1.bf16.msra.mxu0 %v723
    %804 = vmatprep.subr.bf16.mxu0 %v726
    %805 = vmatpush1.bf16.msra.mxu0 %v725
    %806 = vmatprep.subr.bf16.mxu0 %v728
    %807 = vmatpush1.bf16.msra.mxu0 %v727
    %808 = vmatprep.subr.bf16.mxu0 %v800
    %809 = vmatpush1.bf16.msra.mxu0 %v797
    %810 = vmatprep.subr.bf16.mxu0 0
    %811 = vmatpush1.bf16.msra.mxu0 0
    %812 = vmatprep.subr.bf16.mxu0 0
    %813 = vmatpush1.bf16.msra.mxu0 0
    %814 = vmatprep.subr.bf16.mxu0 0
    %815 = vmatpush1.bf16.msra.mxu0 0
    %816 = vmatprep.subr.bf16.mxu0 0
    %817 = vmatpush1.bf16.msra.mxu0 0
    %818 = vmatprep.subr.bf16.mxu0 0
    %819 = vmatpush1.bf16.msra.mxu0 0
    %820 = vmatprep.subr.bf16.mxu0 0
    %821 = vmatpush1.bf16.msra.mxu0 0
    %822 = vmatprep.subr.bf16.mxu0 0
    %823 = vmatpush1.bf16.msra.mxu0 0
    %824 = vmatprep.subr.bf16.mxu0 0
    %825 = vmatpush1.bf16.msra.mxu0 0
    %826 = vmatprep.subr.bf16.mxu0 0
    %827 = vmatpush1.bf16.msra.mxu0 0
    %828 = vmatprep.subr.bf16.mxu0 0
    %829 = vmatpush1.bf16.msra.mxu0 0
    %830 = vmatprep.subr.bf16.mxu0 0
    %831 = vmatpush1.bf16.msra.mxu0 0
    %832 = vmatprep.subr.bf16.mxu0 0
    %833 = vmatpush1.bf16.msra.mxu0 0
    %834 = vmatprep.mubr.bf16.mxu0 0
    %835 = vmatmul.mubr.bf16.gmra.mrb[0].mxu0 %v785
    %v836 = vpop.f32.mrb[0].mxu0
    %v837 = vadd.f32 %v734, %v836
    %v838 = vpop.f32.mrb[0].mxu0
    %v839 = vadd.f32 %v734, %v838
    %v840 = vpop.f32.mrb[0].mxu0
    %v841 = vadd.f32 %v739, %v840
    %v842 = vpop.f32.mrb[0].mxu0
    %v843 = vadd.f32 %v739, %v842
    %844 = vmatprep.mubr.bf16.mxu0 0
    %845 = vmatmul.mubr.bf16.gmra.mrb[0].mxu0 %v788
    %v846 = vpop.f32.mrb[0].mxu0
    %v847 = vadd.f32 %v744, %v846
    %v848 = vpop.f32.mrb[0].mxu0
    %v849 = vadd.f32 %v744, %v848
    %v850 = vpop.f32.mrb[0].mxu0
    %v851 = vadd.f32 %v749, %v850
    %v852 = vpop.f32.mrb[0].mxu0
    %v853 = vadd.f32 %v749, %v852
    %854 = vmatprep.mubr.bf16.mxu0 0
    %855 = vmatmul.mubr.bf16.gmra.mrb[0].mxu0 %v791
    %v856 = vpop.f32.mrb[0].mxu0
    %v857 = vadd.f32 %v754, %v856
    %v858 = vpop.f32.mrb[0].mxu0
    %v859 = vadd.f32 %v754, %v858
    %v860 = vpop.f32.mrb[0].mxu0
    %v861 = vadd.f32 %v759, %v860
    %v862 = vpop.f32.mrb[0].mxu0
    %v863 = vadd.f32 %v759, %v862
    %864 = vmatprep.mubr.bf16.mxu0 0
    %865 = vmatmul.mubr.bf16.gmra.mrb[0].mxu0 %v794
    %v866 = vpop.f32.mrb[0].mxu0
    %v867 = vadd.f32 %v764, %v866
    %v868 = vpop.f32.mrb[0].mxu0
    %v869 = vadd.f32 %v764, %v868
    %v870 = vpop.f32.mrb[0].mxu0
    %v871 = vpop.f32.mrb[0].mxu0
    %872 = vdwg.mxu0
    %v873 = vpack.c.bf16 %v841, %v837
    %v874 = vpack.c.bf16 %v843, %v839
    %v875 = vpack.c.bf16 %v851, %v847
    %v876 = vpack.c.bf16 %v853, %v849
    %v877 = vpack.c.bf16 %v861, %v857
    %v878 = vpack.c.bf16 %v863, %v859
    %v879 = vpack.c.bf16 %v867, %v867
    %v880 = vpack.c.bf16 %v869, %v869
    %v881 = vmul.bf16 %v873, 1067007897
    %v882 = vmul.bf16 %v874, 1067007897
    %v883 = vmul.bf16 %v875, 1067007897
    %v884 = vmul.bf16 %v876, 1067007897
    %v885 = vmul.bf16 %v877, 1067007897
    %v886 = vmul.bf16 %v878, 1067007897
    %v887 = vmul.bf16 %v879, 1067007897
    %v888 = vmul.bf16 %v880, 1067007897
    %v889 = vadd.bf16 %v881, 1070350284
    %v890 = vadd.bf16 %v882, 1070350284
    %v891 = vadd.bf16 %v883, 1070350284
    %v892 = vadd.bf16 %v884, 1070350284
    %v893 = vadd.bf16 %v885, 1070350284
    %v894 = vadd.bf16 %v886, 1070350284
    %v895 = vadd.bf16 %v887, 1070350284
    %v896 = vadd.bf16 %v888, 1070350284
    %v897 = vmul.bf16 %v889, %v873
    %v898 = vmul.bf16 %v890, %v874
    %v899 = vmul.bf16 %v891, %v875
    %v900 = vmul.bf16 %v892, %v876
    %v901 = vmul.bf16 %v893, %v877
    %v902 = vmul.bf16 %v894, %v878
    %v903 = vmul.bf16 %v895, %v879
    %v904 = vmul.bf16 %v896, %v880
    %v905 = vadd.bf16 %v897, 1056980736
    %v906 = vadd.bf16 %v898, 1056980736
    %v907 = vadd.bf16 %v899, 1056980736
    %v908 = vadd.bf16 %v900, 1056980736
    %v909 = vadd.bf16 %v901, 1056980736
    %v910 = vadd.bf16 %v902, 1056980736
    %v911 = vadd.bf16 %v903, 1056980736
    %v912 = vadd.bf16 %v904, 1056980736
    %v913 = vmul.bf16 %v905, %v873
    %v914 = vmul.bf16 %v906, %v874
    %v915 = vmul.bf16 %v907, %v875
    %v916 = vmul.bf16 %v908, %v876
    %v917 = vmul.bf16 %v909, %v877
    %v918 = vmul.bf16 %v910, %v878
    %v919 = vmul.bf16 %v911, %v879
    %v920 = vmul.bf16 %v912, %v880
    %v921 = vadd.bf16 %v913, 1018379443
    %v922 = vadd.bf16 %v914, 1018379443
    %v923 = vadd.bf16 %v915, 1018379443
    %v924 = vadd.bf16 %v916, 1018379443
    %v925 = vadd.bf16 %v917, 1018379443
    %v926 = vadd.bf16 %v918, 1018379443
    %v927 = vadd.bf16 %v919, 1018379443
    %v928 = vadd.bf16 %v920, 1018379443
    %v929 = vmul.bf16 %v873, 1075396633
    %v930 = vmul.bf16 %v874, 1075396633
    %v931 = vmul.bf16 %v875, 1075396633
    %v932 = vmul.bf16 %v876, 1075396633
    %v933 = vmul.bf16 %v877, 1075396633
    %v934 = vmul.bf16 %v878, 1075396633
    %v935 = vmul.bf16 %v879, 1075396633
    %v936 = vmul.bf16 %v880, 1075396633
    %v937 = vmul.bf16 %v929, %v873
    %v938 = vmul.bf16 %v930, %v874
    %v939 = vmul.bf16 %v931, %v875
    %v940 = vmul.bf16 %v932, %v876
    %v941 = vmul.bf16 %v933, %v877
    %v942 = vmul.bf16 %v934, %v878
    %v943 = vmul.bf16 %v935, %v879
    %v944 = vmul.bf16 %v936, %v880
    %v945 = vadd.bf16 %v937, 1065369472
    %v946 = vadd.bf16 %v938, 1065369472
    %v947 = vadd.bf16 %v939, 1065369472
    %v948 = vadd.bf16 %v940, 1065369472
    %v949 = vadd.bf16 %v941, 1065369472
    %v950 = vadd.bf16 %v942, 1065369472
    %v951 = vadd.bf16 %v943, 1065369472
    %v952 = vadd.bf16 %v944, 1065369472
    %v953 = vunpack.c.l.bf16 %v945
    %v954 = vunpack.c.l.bf16 %v946
    %v955 = vunpack.c.h.bf16 %v945
    %v956 = vunpack.c.h.bf16 %v946
    %v957 = vunpack.c.l.bf16 %v947
    %v958 = vunpack.c.l.bf16 %v948
    %v959 = vunpack.c.h.bf16 %v947
    %v960 = vunpack.c.h.bf16 %v948
    %v961 = vunpack.c.l.bf16 %v949
    %v962 = vunpack.c.l.bf16 %v950
    %v963 = vunpack.c.h.bf16 %v949
    %v964 = vunpack.c.h.bf16 %v950
    %v965 = vunpack.c.l.bf16 %v951
    %v966 = vunpack.c.l.bf16 %v952
    %v967 = vrcp.pop %v953
    %v968 = vrcp.pop %v954
    %v969 = vrcp.pop %v955
    %v970 = vrcp.pop %v956
    %v971 = vrcp.pop %v957
    %v972 = vrcp.pop %v958
    %v973 = vrcp.pop %v959
    %v974 = vrcp.pop %v960
    %v975 = vrcp.pop %v961
    %v976 = vrcp.pop %v962
    %v977 = vrcp.pop %v963
    %v978 = vrcp.pop %v964
    %v979 = vrcp.pop %v965
    %v980 = vrcp.pop %v966
    %v981 = vpack.c.bf16 %v969, %v967
    %v982 = vpack.c.bf16 %v970, %v968
    %v983 = vpack.c.bf16 %v973, %v971
    %v984 = vpack.c.bf16 %v974, %v972
    %v985 = vpack.c.bf16 %v977, %v975
    %v986 = vpack.c.bf16 %v978, %v976
    %v987 = vpack.c.bf16 %v979, %v979
    %v988 = vpack.c.bf16 %v980, %v980
    %v989 = vmul.bf16 %v921, %v981
    %v990 = vmul.bf16 %v922, %v982
    %v991 = vmul.bf16 %v923, %v983
    %v992 = vmul.bf16 %v924, %v984
    %v993 = vmul.bf16 %v925, %v985
    %v994 = vmul.bf16 %v926, %v986
    %v995 = vmul.bf16 %v927, %v987
    %v996 = vmul.bf16 %v928, %v988
    %998 = vset.pattern.permute.xlu0 0
    %999 = vperm.xlu0 %998, %v98
    %v1000 = vpop.permute.xlu0 %999
    %1003 = vset.pattern.permute.xlu0 0
    %1004 = vperm.xlu0 %1003, %v99
    %v1005 = vpop.permute.xlu0 %1004
    %1008 = vset.pattern.permute.xlu0 0
    %1009 = vperm.xlu0 %1008, %v100
    %v1010 = vpop.permute.xlu0 %1009
    %1013 = vset.pattern.permute.xlu0 0
    %1014 = vperm.xlu0 %1013, %v101
    %v1015 = vpop.permute.xlu0 %1014
    %1018 = vset.pattern.permute.xlu0 0
    %1019 = vperm.xlu0 %1018, %v102
    %v1020 = vpop.permute.xlu0 %1019
    %1023 = vset.pattern.permute.xlu0 0
    %1024 = vperm.xlu0 %1023, %v103
    %v1025 = vpop.permute.xlu0 %1024
    %1028 = vset.pattern.permute.xlu0 0
    %1029 = vperm.xlu0 %1028, %v104
    %v1030 = vpop.permute.xlu0 %1029
    %v1039 = vunpack.c.l.b16 %v69
    %v1040 = vunpack.c.l.b16 %v70
    %v1041 = vunpack.c.l.b16 %v71
    %v1042 = vunpack.c.l.b16 %v72
    %v1043 = vunpack.c.l.b16 %v73
    %v1044 = vunpack.c.l.b16 %v74
    %v1045 = vunpack.c.l.b16 %v75
    %v1046 = vpack.c.b16 %v1040, %v1039
    %v1047 = vpack.c.b16 %v1042, %v1041
    %v1048 = vpack.c.b16 %v1044, %v1043
    %v1049 = vpack.c.b16 %v1045, %v1045
    %v1051 = vsel %vm516, %v1046, 0
    %v1054 = vsel %vm516, %v1047, 0
    %v1057 = vsel %vm516, %v1048, 0
    %v1060 = vsel %vm516, %v1049, 0
    %v1063 = vsel %vm529, %v995, 0
    %v1066 = vsel %vm529, %v996, 0
    %1068 = vmatprep.subr.bf16.mxu0 %v990
    %1069 = vmatpush1.bf16.msra.mxu0 %v989
    %1070 = vmatprep.subr.bf16.mxu0 %v992
    %1071 = vmatpush1.bf16.msra.mxu0 %v991
    %1072 = vmatprep.subr.bf16.mxu0 %v994
    %1073 = vmatpush1.bf16.msra.mxu0 %v993
    %1074 = vmatprep.subr.bf16.mxu0 %v1066
    %1075 = vmatpush1.bf16.msra.mxu0 %v1063
    %1076 = vmatprep.subr.bf16.mxu0 0
    %1077 = vmatpush1.bf16.msra.mxu0 0
    %1078 = vmatprep.subr.bf16.mxu0 0
    %1079 = vmatpush1.bf16.msra.mxu0 0
    %1080 = vmatprep.subr.bf16.mxu0 0
    %1081 = vmatpush1.bf16.msra.mxu0 0
    %1082 = vmatprep.subr.bf16.mxu0 0
    %1083 = vmatpush1.bf16.msra.mxu0 0
    %1084 = vmatprep.subr.bf16.mxu0 0
    %1085 = vmatpush1.bf16.msra.mxu0 0
    %1086 = vmatprep.subr.bf16.mxu0 0
    %1087 = vmatpush1.bf16.msra.mxu0 0
    %1088 = vmatprep.subr.bf16.mxu0 0
    %1089 = vmatpush1.bf16.msra.mxu0 0
    %1090 = vmatprep.subr.bf16.mxu0 0
    %1091 = vmatpush1.bf16.msra.mxu0 0
    %1092 = vmatprep.subr.bf16.mxu0 0
    %1093 = vmatpush1.bf16.msra.mxu0 0
    %1094 = vmatprep.subr.bf16.mxu0 0
    %1095 = vmatpush1.bf16.msra.mxu0 0
    %1096 = vmatprep.subr.bf16.mxu0 0
    %1097 = vmatpush1.bf16.msra.mxu0 0
    %1098 = vmatprep.subr.bf16.mxu0 0
    %1099 = vmatpush1.bf16.msra.mxu0 0
    %1100 = vmatprep.mubr.bf16.mxu0 0
    %1101 = vmatmul.mubr.bf16.gmra.mrb[0].mxu0 %v1051
    %v1102 = vpop.f32.mrb[0].mxu0
    %v1103 = vadd.f32 %v1000, %v1102
    %v1104 = vpop.f32.mrb[0].mxu0
    %v1105 = vadd.f32 %v1000, %v1104
    %v1106 = vpop.f32.mrb[0].mxu0
    %v1107 = vadd.f32 %v1005, %v1106
    %v1108 = vpop.f32.mrb[0].mxu0
    %v1109 = vadd.f32 %v1005, %v1108
    %1110 = vmatprep.mubr.bf16.mxu0 0
    %1111 = vmatmul.mubr.bf16.gmra.mrb[0].mxu0 %v1054
    %v1112 = vpop.f32.mrb[0].mxu0
    %v1113 = vadd.f32 %v1010, %v1112
    %v1114 = vpop.f32.mrb[0].mxu0
    %v1115 = vadd.f32 %v1010, %v1114
    %v1116 = vpop.f32.mrb[0].mxu0
    %v1117 = vadd.f32 %v1015, %v1116
    %v1118 = vpop.f32.mrb[0].mxu0
    %v1119 = vadd.f32 %v1015, %v1118
    %1120 = vmatprep.mubr.bf16.mxu0 0
    %1121 = vmatmul.mubr.bf16.gmra.mrb[0].mxu0 %v1057
    %v1122 = vpop.f32.mrb[0].mxu0
    %v1123 = vadd.f32 %v1020, %v1122
    %v1124 = vpop.f32.mrb[0].mxu0
    %v1125 = vadd.f32 %v1020, %v1124
    %v1126 = vpop.f32.mrb[0].mxu0
    %v1127 = vadd.f32 %v1025, %v1126
    %v1128 = vpop.f32.mrb[0].mxu0
    %v1129 = vadd.f32 %v1025, %v1128
    %1130 = vmatprep.mubr.bf16.mxu0 0
    %1131 = vmatmul.mubr.bf16.gmra.mrb[0].mxu0 %v1060
    %v1132 = vpop.f32.mrb[0].mxu0
    %v1133 = vadd.f32 %v1030, %v1132
    %v1134 = vpop.f32.mrb[0].mxu0
    %v1135 = vadd.f32 %v1030, %v1134
    %v1136 = vpop.f32.mrb[0].mxu0
    %v1137 = vpop.f32.mrb[0].mxu0
    %1138 = vdwg.mxu0
    %v1139 = vpack.c.bf16 %v1107, %v1103
    %v1140 = vpack.c.bf16 %v1109, %v1105
    %v1141 = vpack.c.bf16 %v1117, %v1113
    %v1142 = vpack.c.bf16 %v1119, %v1115
    %v1143 = vpack.c.bf16 %v1127, %v1123
    %v1144 = vpack.c.bf16 %v1129, %v1125
    %v1145 = vpack.c.bf16 %v1133, %v1133
    %v1146 = vpack.c.bf16 %v1135, %v1135
    %v1147 = vmul.bf16 %v1139, 1067007897
    %v1148 = vmul.bf16 %v1140, 1067007897
    %v1149 = vmul.bf16 %v1141, 1067007897
    %v1150 = vmul.bf16 %v1142, 1067007897
    %v1151 = vmul.bf16 %v1143, 1067007897
    %v1152 = vmul.bf16 %v1144, 1067007897
    %v1153 = vmul.bf16 %v1145, 1067007897
    %v1154 = vmul.bf16 %v1146, 1067007897
    %v1155 = vadd.bf16 %v1147, 1070350284
    %v1156 = vadd.bf16 %v1148, 1070350284
    %v1157 = vadd.bf16 %v1149, 1070350284
    %v1158 = vadd.bf16 %v1150, 1070350284
    %v1159 = vadd.bf16 %v1151, 1070350284
    %v1160 = vadd.bf16 %v1152, 1070350284
    %v1161 = vadd.bf16 %v1153, 1070350284
    %v1162 = vadd.bf16 %v1154, 1070350284
    %v1163 = vmul.bf16 %v1155, %v1139
    %v1164 = vmul.bf16 %v1156, %v1140
    %v1165 = vmul.bf16 %v1157, %v1141
    %v1166 = vmul.bf16 %v1158, %v1142
    %v1167 = vmul.bf16 %v1159, %v1143
    %v1168 = vmul.bf16 %v1160, %v1144
    %v1169 = vmul.bf16 %v1161, %v1145
    %v1170 = vmul.bf16 %v1162, %v1146
    %v1171 = vadd.bf16 %v1163, 1056980736
    %v1172 = vadd.bf16 %v1164, 1056980736
    %v1173 = vadd.bf16 %v1165, 1056980736
    %v1174 = vadd.bf16 %v1166, 1056980736
    %v1175 = vadd.bf16 %v1167, 1056980736
    %v1176 = vadd.bf16 %v1168, 1056980736
    %v1177 = vadd.bf16 %v1169, 1056980736
    %v1178 = vadd.bf16 %v1170, 1056980736
    %v1179 = vmul.bf16 %v1171, %v1139
    %v1180 = vmul.bf16 %v1172, %v1140
    %v1181 = vmul.bf16 %v1173, %v1141
    %v1182 = vmul.bf16 %v1174, %v1142
    %v1183 = vmul.bf16 %v1175, %v1143
    %v1184 = vmul.bf16 %v1176, %v1144
    %v1185 = vmul.bf16 %v1177, %v1145
    %v1186 = vmul.bf16 %v1178, %v1146
    %v1187 = vadd.bf16 %v1179, 1018379443
    %v1188 = vadd.bf16 %v1180, 1018379443
    %v1189 = vadd.bf16 %v1181, 1018379443
    %v1190 = vadd.bf16 %v1182, 1018379443
    %v1191 = vadd.bf16 %v1183, 1018379443
    %v1192 = vadd.bf16 %v1184, 1018379443
    %v1193 = vadd.bf16 %v1185, 1018379443
    %v1194 = vadd.bf16 %v1186, 1018379443
    %v1195 = vmul.bf16 %v1139, 1075396633
    %v1196 = vmul.bf16 %v1140, 1075396633
    %v1197 = vmul.bf16 %v1141, 1075396633
    %v1198 = vmul.bf16 %v1142, 1075396633
    %v1199 = vmul.bf16 %v1143, 1075396633
    %v1200 = vmul.bf16 %v1144, 1075396633
    %v1201 = vmul.bf16 %v1145, 1075396633
    %v1202 = vmul.bf16 %v1146, 1075396633
    %v1203 = vmul.bf16 %v1195, %v1139
    %v1204 = vmul.bf16 %v1196, %v1140
    %v1205 = vmul.bf16 %v1197, %v1141
    %v1206 = vmul.bf16 %v1198, %v1142
    %v1207 = vmul.bf16 %v1199, %v1143
    %v1208 = vmul.bf16 %v1200, %v1144
    %v1209 = vmul.bf16 %v1201, %v1145
    %v1210 = vmul.bf16 %v1202, %v1146
    %v1211 = vadd.bf16 %v1203, 1065369472
    %v1212 = vadd.bf16 %v1204, 1065369472
    %v1213 = vadd.bf16 %v1205, 1065369472
    %v1214 = vadd.bf16 %v1206, 1065369472
    %v1215 = vadd.bf16 %v1207, 1065369472
    %v1216 = vadd.bf16 %v1208, 1065369472
    %v1217 = vadd.bf16 %v1209, 1065369472
    %v1218 = vadd.bf16 %v1210, 1065369472
    %v1219 = vunpack.c.l.bf16 %v1211
    %v1220 = vunpack.c.l.bf16 %v1212
    %v1221 = vunpack.c.h.bf16 %v1211
    %v1222 = vunpack.c.h.bf16 %v1212
    %v1223 = vunpack.c.l.bf16 %v1213
    %v1224 = vunpack.c.l.bf16 %v1214
    %v1225 = vunpack.c.h.bf16 %v1213
    %v1226 = vunpack.c.h.bf16 %v1214
    %v1227 = vunpack.c.l.bf16 %v1215
    %v1228 = vunpack.c.l.bf16 %v1216
    %v1229 = vunpack.c.h.bf16 %v1215
    %v1230 = vunpack.c.h.bf16 %v1216
    %v1231 = vunpack.c.l.bf16 %v1217
    %v1232 = vunpack.c.l.bf16 %v1218
    %v1233 = vrcp.pop %v1219
    %v1234 = vrcp.pop %v1220
    %v1235 = vrcp.pop %v1221
    %v1236 = vrcp.pop %v1222
    %v1237 = vrcp.pop %v1223
    %v1238 = vrcp.pop %v1224
    %v1239 = vrcp.pop %v1225
    %v1240 = vrcp.pop %v1226
    %v1241 = vrcp.pop %v1227
    %v1242 = vrcp.pop %v1228
    %v1243 = vrcp.pop %v1229
    %v1244 = vrcp.pop %v1230
    %v1245 = vrcp.pop %v1231
    %v1246 = vrcp.pop %v1232
    %v1247 = vpack.c.bf16 %v1235, %v1233
    %v1248 = vpack.c.bf16 %v1236, %v1234
    %v1249 = vpack.c.bf16 %v1239, %v1237
    %v1250 = vpack.c.bf16 %v1240, %v1238
    %v1251 = vpack.c.bf16 %v1243, %v1241
    %v1252 = vpack.c.bf16 %v1244, %v1242
    %v1253 = vpack.c.bf16 %v1245, %v1245
    %v1254 = vpack.c.bf16 %v1246, %v1246
    %v1255 = vmul.bf16 %v1187, %v1247
    %v1256 = vmul.bf16 %v1188, %v1248
    %v1257 = vmul.bf16 %v1189, %v1249
    %v1258 = vmul.bf16 %v1190, %v1250
    %v1259 = vmul.bf16 %v1191, %v1251
    %v1260 = vmul.bf16 %v1192, %v1252
    %v1261 = vmul.bf16 %v1193, %v1253
    %v1262 = vmul.bf16 %v1194, %v1254
    %1264 = vset.pattern.permute.xlu0 0
    %1265 = vperm.xlu0 %1264, %v105
    %v1266 = vpop.permute.xlu0 %1265
    %v1268 = vlaneseq
    %v1269 = vshrl.u32 %v1268, 7
    %v1270 = vsub.s32 0, %v1269
    %v1271 = vrot.slane %v1266, %v1270
    %v1273 = vsel %vm516, %v76, 0
    %v1276 = vsel %vm529, %v1261, 0
    %v1279 = vsel %vm529, %v1262, 0
    %1281 = vmatprep.subr.bf16.mxu0 %v1256
    %1282 = vmatpush1.bf16.msra.mxu0 %v1255
    %1283 = vmatprep.subr.bf16.mxu0 %v1258
    %1284 = vmatpush1.bf16.msra.mxu0 %v1257
    %1285 = vmatprep.subr.bf16.mxu0 %v1260
    %1286 = vmatpush1.bf16.msra.mxu0 %v1259
    %1287 = vmatprep.subr.bf16.mxu0 %v1279
    %1288 = vmatpush1.bf16.msra.mxu0 %v1276
    %1289 = vmatprep.subr.bf16.mxu0 0
    %1290 = vmatpush1.bf16.msra.mxu0 0
    %1291 = vmatprep.subr.bf16.mxu0 0
    %1292 = vmatpush1.bf16.msra.mxu0 0
    %1293 = vmatprep.subr.bf16.mxu0 0
    %1294 = vmatpush1.bf16.msra.mxu0 0
    %1295 = vmatprep.subr.bf16.mxu0 0
    %1296 = vmatpush1.bf16.msra.mxu0 0
    %1297 = vmatprep.subr.bf16.mxu0 0
    %1298 = vmatpush1.bf16.msra.mxu0 0
    %1299 = vmatprep.subr.bf16.mxu0 0
    %1300 = vmatpush1.bf16.msra.mxu0 0
    %1301 = vmatprep.subr.bf16.mxu0 0
    %1302 = vmatpush1.bf16.msra.mxu0 0
    %1303 = vmatprep.subr.bf16.mxu0 0
    %1304 = vmatpush1.bf16.msra.mxu0 0
    %1305 = vmatprep.subr.bf16.mxu0 0
    %1306 = vmatpush1.bf16.msra.mxu0 0
    %1307 = vmatprep.subr.bf16.mxu0 0
    %1308 = vmatpush1.bf16.msra.mxu0 0
    %1309 = vmatprep.subr.bf16.mxu0 0
    %1310 = vmatpush1.bf16.msra.mxu0 0
    %1311 = vmatprep.subr.bf16.mxu0 0
    %1312 = vmatpush1.bf16.msra.mxu0 0
    %1313 = vmatprep.mubr.bf16.mxu0 0
    %1314 = vmatmul.mubr.bf16.gmra.mrb[0].mxu0 %v1273
    %v1315 = vpop.f32.mrb[0].mxu0
    %v1316 = vadd.f32 %v1271, %v1315
    %v1317 = vpop.f32.mrb[0].mxu0
    %v1318 = vadd.f32 %v1271, %v1317
    %v1319 = vpop.f32.mrb[0].mxu0
    %v1320 = vpop.f32.mrb[0].mxu0
    %1321 = vdwg.mxu0
    %v1324 = vcombine.low %v1316, %v1318
    %v1326 = vunpack.c.l.s4 1966171168
    %v1327 = vunpack.c.0.s8 %v1326
    %v1328 = vlaneseq
    %v1329 = vshrl.u32 %v1328, 7
    %v1330 = vsub.s32 %v1327, %v1329
    %v1331 = vrot.slane %v1324, %v1330
    %v1333 = vunpack.c.l.s4 1966171168
    %v1334 = vunpack.c.0.s8 %v1333
    %v1335 = vlaneseq
    %v1336 = vshrl.u32 %v1335, 7
    %v1337 = vsub.s32 %v1334, %v1336
    %v1338 = vrot.slane %v1331, %v1337
    %v1340 = vlaneseq
    %vm1341 = vcmp.ge.s32.totalorder %v1340, 0
    %vm1342 = vcmp.lt.s32.totalorder %v1340, 256
    %vm1343 = vmand %vm1341, %vm1342
    %1344 = vst.msk [vmem:[#allocation3] sm:$0x3] %vm1343, %v1338
    // Predicated region
    $region46: #{tpu_custom_call.1} parent=1 // pred_check
      _
    $region47: #{tpu_custom_call.1} parent=1 // pred_check_branch
      %1346 = sbr.rel (0) target = $region49
    $region48: #{tpu_custom_call.1} parent=1 // pred_region
      %s1348 = ssub.s32 32, 16
      %1349 = vsyncadd [#allocation4], %s1348
      %s1351 = sshll.u32 [#allocation3], 4
      %s1352 = int_to_ptr.vmem [resolvable:$true] %s1351
      %1354 = dma.vmem_to_hbm [thread:$0]  %s1352, 16, %s11, [#allocation4]
    $region49: #{tpu_custom_call.1} parent=1 // pred_fallthru
      _
    // Predicated region
    $region50: #{tpu_custom_call.1} parent=1 // pred_check
      _
    $region51: #{tpu_custom_call.1} parent=1 // pred_check_branch
      %1356 = sbr.rel (0) target = $region53
    $region52: #{tpu_custom_call.1} parent=1 // pred_region
      %1357 = dma.done [#allocation4], 32
    $region53: #{tpu_custom_call.1} parent=1 // pred_fallthru
      _
    %1358 = vsyncpa [#allocation4], 1

</llo_original>
